<compile_context>
chip_gen: v7x
topology: tpu7x:2x2x1
jax: 0.10.0
libtpu: 0.0.40
codegen_flags: <defaults>
</compile_context>

<pallas_src>
import functools

import numpy as np
import jax
import jax.numpy as jnp
from jax.experimental import pallas as pl
from jax.experimental.pallas import tpu as pltpu


def _round_up(v, m):
    return (v + m - 1) // m * m


def _og_tree_kernel(x_ref, wt_ref, bias_ref, m_ref, anc_ref, c_ref, p_ref,
                    out_ref, *, max_depth):
    """One batch tile through the whole tree.

    x_ref     : (BT, num_input)  input rows (batch-padded only)
    wt_ref    : (num_input, NN)  alpha-folded node weights, transposed, heap order
    bias_ref  : (1,  NN)  alpha-folded per-node bias
    m_ref     : (NN, NL)  A * (2*Dir - 1)   signed ancestor/direction matrix (bf16)
    anc_ref   : (NN, NL)  A                 ancestor indicator matrix (f32)
    c_ref     : (1,  NL)  max_depth - sum_n A*Dir for real leaves, -1e9 padded
    p_ref     : (NL, NO)  leaf prob distributions
    out_ref   : (BT, NO)
    """
    x = x_ref[...]

    # All internal-node pre-activations in one MXU matmul (alpha already
    # folded into W and bias host-side).
    z = jnp.dot(x, wt_ref[...], preferred_element_type=jnp.float32)      # (BT, NN)
    vals = jax.nn.sigmoid(z + bias_ref[...])                             # (BT, NN)

    # Hard routing decision at every node (1 = go right) and the probability
    # of the branch actually taken (always >= 0.5).
    d = (vals >= jnp.float32(0.5)).astype(jnp.float32)                   # (BT, NN)
    g = 0.5 + jnp.abs(vals - 0.5)                                        # (BT, NN)

    # Leaf selection: score[b, l] = #ancestors of leaf l whose hard decision
    # matches the direction towards l, shifted so only the reached leaf hits
    # max_depth.  d and M are exact in bf16 (0/+-1) -> full-rate MXU with f32
    # accumulation; the -1e9 sentinel add and the compare stay in f32.
    score = jnp.dot(d.astype(jnp.bfloat16), m_ref[...],
                    preferred_element_type=jnp.float32) + c_ref[...]     # (BT, NL)
    onehot = (score > jnp.float32(max_depth) - 0.5).astype(jnp.float32)  # (BT, NL)

    # Gate product along every root->leaf path via a log-domain matmul (f32:
    # log(g) is not exact in bf16).  Padded node rows of A are zero so they
    # contribute nothing; g >= 0.5 keeps log(g) well behaved.  The one-hot
    # then selects the reached leaf with a single lane reduce + exp per row.
    log_gate = jnp.dot(jnp.log(g), anc_ref[...],
                       preferred_element_type=jnp.float32)               # (BT, NL)
    gate = jnp.exp(jnp.sum(onehot * log_gate, axis=-1, keepdims=True))   # (BT, 1)

    # Chosen leaf distribution, scaled by the path gate product.
    leaf_dist = jnp.dot(onehot, p_ref[...],
                        preferred_element_type=jnp.float32)              # (BT, NO)
    out_ref[...] = (gate * leaf_dist).astype(out_ref.dtype)


def make_og_tree(node_w, node_b, node_a, leaf_p, max_depth, *,
                 batch_tile=512, compute_dtype=jnp.float32):
    """One-time parameter prep (host-side padding + ancestor matrices) plus a
    jitted batched forward: x (B, num_input) -> (B, num_output).

    batch_tile: default 512 (near HBM roofline per measured Pallas data);
    automatically halved (>= 128) so the batch grid keeps >= 2 steps when the
    batch allows it, so v7x's two TensorCores are both used.
    compute_dtype: dtype of the x @ W^T matmul operands.  jnp.bfloat16 halves
    the dominant x DMA stream and doubles first-matmul MXU rate, but samples
    with pre-activation within ~1e-3 relative of zero may flip their hard
    branch vs the f32 reference; keep float32 when that matters.
    """
    assert batch_tile % 128 == 0

    node_w = np.asarray(node_w, np.float32)
    node_b = np.asarray(node_b, np.float32).reshape(-1)
    node_a = np.asarray(node_a, np.float32).reshape(-1)
    leaf_p = np.asarray(leaf_p, np.float32)

    num_internal, num_input = node_w.shape
    num_leaves, num_output = leaf_p.shape
    assert num_internal == 2 ** max_depth - 1
    assert num_leaves == 2 ** max_depth

    NN = _round_up(num_internal, 128)
    NL = _round_up(num_leaves, 128)
    NO = _round_up(num_output, 128)
    # TODO(synk): for deep trees (max_depth >= ~11, NN=NL >= 2048) add a
    # leaf-axis grid dimension tiling NL for m/anc/c/p (plus an NN reduction
    # axis) and pipeline_mode=pl.Buffered(1) on the constant-index parameter
    # specs so the (NN, NL) matrices fit v7x's 32 MiB scoped / 64 MiB VMEM.

    # Ancestor (A) and direction (Dir) matrices in heap order: column l is the
    # root-to-leaf path of leaf ordinal l (its bits, MSB first).
    A = np.zeros((num_internal, num_leaves), np.float32)
    Dir = np.zeros((num_internal, num_leaves), np.float32)
    for leaf in range(num_leaves):
        idx = 0
        for t in range(max_depth):
            bit = (leaf >> (max_depth - 1 - t)) & 1
            A[idx, leaf] = 1.0
            Dir[idx, leaf] = float(bit)
            idx = 2 * idx + 1 + bit
        assert idx - num_internal == leaf

    M = A * (2.0 * Dir - 1.0)
    c = max_depth - (A * Dir).sum(axis=0)

    # Pad everything ONCE on the host; nothing is rebuilt per forward call.
    # alpha is folded into W and bias: alpha*(x@w + b) == x@(alpha*w) + alpha*b.
    wt_p = np.zeros((num_input, NN), np.float32)
    wt_p[:, :num_internal] = (node_a[:, None] * node_w).T
    b_p = np.zeros((1, NN), np.float32)
    b_p[0, :num_internal] = node_a * node_b
    m_p = np.zeros((NN, NL), np.float32); m_p[:num_internal, :num_leaves] = M
    anc_p = np.zeros((NN, NL), np.float32); anc_p[:num_internal, :num_leaves] = A
    c_p = np.full((1, NL), -1e9, np.float32); c_p[0, :num_leaves] = c
    p_p = np.zeros((NL, NO), np.float32); p_p[:num_leaves, :num_output] = leaf_p

    wt_j = jnp.asarray(wt_p, compute_dtype)
    b_j = jnp.asarray(b_p)
    m_j = jnp.asarray(m_p, jnp.bfloat16)   # entries in {-1, 0, +1}: exact in bf16
    anc_j = jnp.asarray(anc_p)             # f32: multiplies f32 log(g)
    c_j = jnp.asarray(c_p)
    p_j = jnp.asarray(p_p)

    kernel = functools.partial(_og_tree_kernel, max_depth=max_depth)

    @jax.jit
    def forward(x):
        B = x.shape[0]

        # Pick the batch tile: start large, but keep >= 2 grid steps when the
        # batch allows it so v7x's two TensorCores both get work.
        tile_b = batch_tile
        while (tile_b >= 256 and tile_b % 256 == 0
               and _round_up(B, tile_b) // tile_b < 2):
            tile_b //= 2
        BP = _round_up(B, tile_b)

        xc = x.astype(compute_dtype)
        if BP != B:  # pad the batch axis only; no-op when B % tile_b == 0
            xc = jnp.pad(xc, ((0, BP - B), (0, 0)))

        out = pl.pallas_call(
            kernel,
            out_shape=jax.ShapeDtypeStruct((BP, NO), jnp.float32),
            grid=(BP // tile_b,),
            in_specs=[
                # x: no feature-axis padding (block dim == full array dim).
                pl.BlockSpec((tile_b, num_input), lambda i: (i, 0)),
                # Constant block index -> parameters stay VMEM-resident across
                # the batch grid axis (no per-step re-DMA).
                pl.BlockSpec((num_input, NN), lambda i: (0, 0)),
                pl.BlockSpec((1, NN), lambda i: (0, 0)),
                pl.BlockSpec((NN, NL), lambda i: (0, 0)),
                pl.BlockSpec((NN, NL), lambda i: (0, 0)),
                pl.BlockSpec((1, NL), lambda i: (0, 0)),
                pl.BlockSpec((NL, NO), lambda i: (0, 0)),
            ],
            out_specs=pl.BlockSpec((tile_b, NO), lambda i: (i, 0)),
            compiler_params=pltpu.CompilerParams(
                dimension_semantics=("parallel",)),
        )(xc, wt_j, b_j, m_j, anc_j, c_j, p_j)

        return out[:B, :num_output]

    return forward


def _numpy_reference_row(x, node_w, node_b, node_a, leaf_p, max_depth):
    """Direct port of the recursive PyTorch forward (heap-ordered params)."""
    x = np.asarray(x, np.float64)
    idx = 0
    gate = 1.0
    for _ in range(max_depth):
        pre = node_a[idx] * (x @ node_w[idx] + node_b[idx])
        val = 1.0 / (1.0 + np.exp(-pre))
        if val >= 0.5:
            gate *= val
            idx = 2 * idx + 2
        else:
            gate *= (1.0 - val)
            idx = 2 * idx + 1
    leaf = idx - (2 ** max_depth - 1)
    return gate * np.asarray(leaf_p, np.float64)[leaf]


if __name__ == "__main__":
    # Small shapes consistent with the module: x rows are flat feature vectors.
    num_input, num_output, max_depth = 32, 8, 3
    batch = 256                        # -> 2 grid steps of 128: exercises the
    num_internal = 2 ** max_depth - 1  #    parallel batch axis (v7x megacore)
    num_leaves = 2 ** max_depth        #    and the auto tile halving.

    # Deterministic synthetic parameters (same per-node shapes as
    # OGTree.__init__), drawn from PRNGKey(0) so routing is non-trivial.
    key = jax.random.PRNGKey(0)
    k_w, k_b, k_a, k_p, k_x = jax.random.split(key, 5)
    node_w = jax.random.normal(k_w, (num_internal, num_input), jnp.float32) * 0.1
    node_b = jax.random.normal(k_b, (num_internal,), jnp.float32) * 0.1
    node_a = jax.random.normal(k_a, (num_internal,), jnp.float32)
    leaf_p = jax.random.normal(k_p, (num_leaves, num_output), jnp.float32)
    x = jax.random.normal(k_x, (batch, num_input), jnp.float32)

    forward = make_og_tree(node_w, node_b, node_a, leaf_p, max_depth,
                           batch_tile=512)
    out = jax.block_until_ready(forward(x))

    w_np = np.asarray(node_w); b_np = np.asarray(node_b)
    a_np = np.asarray(node_a); p_np = np.asarray(leaf_p); x_np = np.asarray(x)
    ref = np.stack([
        _numpy_reference_row(x_np[i], w_np, b_np, a_np, p_np, max_depth)
        for i in range(batch)])

    np.testing.assert_allclose(np.asarray(out), ref, rtol=1e-4, atol=1e-5)
    print("KERNEL_OK")
</pallas_src>

<mosaic_0001>
module attributes {stable_mosaic.version = 11 : i64} {
  func.func @_og_tree_kernel(%arg0: i32, %arg1: memref<128x32xf32, #tpu.memory_space<vmem>>, %arg2: memref<32x128xf32, #tpu.memory_space<vmem>>, %arg3: memref<1x128xf32, #tpu.memory_space<vmem>>, %arg4: memref<128x128xbf16, #tpu.memory_space<vmem>>, %arg5: memref<128x128xf32, #tpu.memory_space<vmem>>, %arg6: memref<1x128xf32, #tpu.memory_space<vmem>>, %arg7: memref<128x128xf32, #tpu.memory_space<vmem>>, %arg8: memref<128x128xf32, #tpu.memory_space<vmem>>) attributes {dimension_semantics = [#tpu.dimension_semantics<parallel>], iteration_bounds = array<i64: 2>, scalar_prefetch = 0 : i64, scratch_operands = 0 : i64, tpu.core_type = #tpu.core_type<tc>, window_params = [{transform_indices = @transform_0, window_bounds = array<i64: 128, 32>}, {pipeline_mode = #tpu.pipeline_mode<synchronous>, transform_indices = @transform_1, window_bounds = array<i64: 32, 128>}, {pipeline_mode = #tpu.pipeline_mode<synchronous>, transform_indices = @transform_2, window_bounds = array<i64: 1, 128>}, {pipeline_mode = #tpu.pipeline_mode<synchronous>, transform_indices = @transform_3, window_bounds = array<i64: 128, 128>}, {pipeline_mode = #tpu.pipeline_mode<synchronous>, transform_indices = @transform_4, window_bounds = array<i64: 128, 128>}, {pipeline_mode = #tpu.pipeline_mode<synchronous>, transform_indices = @transform_5, window_bounds = array<i64: 1, 128>}, {pipeline_mode = #tpu.pipeline_mode<synchronous>, transform_indices = @transform_6, window_bounds = array<i64: 128, 128>}, {transform_indices = @transform_7, window_bounds = array<i64: 128, 128>}]} {
    %c0 = arith.constant 0 : index
    %c0_0 = arith.constant 0 : index
    %0 = vector.load %arg1[%c0, %c0_0] : memref<128x32xf32, #tpu.memory_space<vmem>>, vector<128x32xf32>
    %c0_1 = arith.constant 0 : index
    %c0_2 = arith.constant 0 : index
    %1 = vector.load %arg2[%c0_1, %c0_2] : memref<32x128xf32, #tpu.memory_space<vmem>>, vector<32x128xf32>
    %cst = arith.constant dense<0.000000e+00> : vector<128x128xf32>
    %2 = tpu.matmul %0, %1, %cst {dimension_numbers = #tpu.dot_dimension_numbers<[1], [0], [0], [1], [0, 0, 1, 1], [], []>} : vector<128x32xf32>, vector<32x128xf32>, vector<128x128xf32> -> vector<128x128xf32>
    %c0_3 = arith.constant 0 : index
    %c0_4 = arith.constant 0 : index
    %3 = vector.load %arg3[%c0_3, %c0_4] : memref<1x128xf32, #tpu.memory_space<vmem>>, vector<1x128xf32>
    %4 = vector.broadcast %3 : vector<1x128xf32> to vector<128x128xf32>
    %5 = arith.addf %2, %4 : vector<128x128xf32>
    %6 = arith.negf %5 : vector<128x128xf32>
    %7 = math.exp %6 : vector<128x128xf32>
    %cst_5 = arith.constant 1.000000e+00 : f32
    %8 = vector.broadcast %cst_5 : f32 to vector<128x128xf32>
    %9 = arith.addf %8, %7 : vector<128x128xf32>
    %10 = arith.divf %8, %9 : vector<128x128xf32>
    %cst_6 = arith.constant 5.000000e-01 : f32
    %11 = vector.broadcast %cst_6 : f32 to vector<128x128xf32>
    %12 = arith.cmpf oge, %10, %11 : vector<128x128xf32>
    %13 = arith.extui %12 : vector<128x128xi1> to vector<128x128xi32>
    %14 = arith.sitofp %13 : vector<128x128xi32> to vector<128x128xf32>
    %cst_7 = arith.constant 5.000000e-01 : f32
    %15 = vector.broadcast %cst_7 : f32 to vector<128x128xf32>
    %16 = arith.subf %10, %15 : vector<128x128xf32>
    %17 = math.absf %16 : vector<128x128xf32>
    %cst_8 = arith.constant 5.000000e-01 : f32
    %18 = vector.broadcast %cst_8 : f32 to vector<128x128xf32>
    %19 = arith.addf %18, %17 : vector<128x128xf32>
    %20 = arith.truncf %14 : vector<128x128xf32> to vector<128x128xbf16>
    %c0_9 = arith.constant 0 : index
    %c0_10 = arith.constant 0 : index
    %21 = vector.load %arg4[%c0_9, %c0_10] : memref<128x128xbf16, #tpu.memory_space<vmem>>, vector<128x128xbf16>
    %cst_11 = arith.constant dense<0.000000e+00> : vector<128x128xf32>
    %22 = tpu.matmul %20, %21, %cst_11 {dimension_numbers = #tpu.dot_dimension_numbers<[1], [0], [0], [1], [0, 0, 1, 1], [], []>} : vector<128x128xbf16>, vector<128x128xbf16>, vector<128x128xf32> -> vector<128x128xf32>
    %c0_12 = arith.constant 0 : index
    %c0_13 = arith.constant 0 : index
    %23 = vector.load %arg6[%c0_12, %c0_13] : memref<1x128xf32, #tpu.memory_space<vmem>>, vector<1x128xf32>
    %24 = vector.broadcast %23 : vector<1x128xf32> to vector<128x128xf32>
    %25 = arith.addf %22, %24 : vector<128x128xf32>
    %cst_14 = arith.constant 3.000000e+00 : f32
    %cst_15 = arith.constant 5.000000e-01 : f32
    %26 = arith.subf %cst_14, %cst_15 : f32
    %27 = vector.broadcast %26 : f32 to vector<128x128xf32>
    %28 = arith.cmpf ogt, %25, %27 : vector<128x128xf32>
    %29 = arith.extui %28 : vector<128x128xi1> to vector<128x128xi32>
    %30 = arith.sitofp %29 : vector<128x128xi32> to vector<128x128xf32>
    %31 = math.log %19 : vector<128x128xf32>
    %c0_16 = arith.constant 0 : index
    %c0_17 = arith.constant 0 : index
    %32 = vector.load %arg5[%c0_16, %c0_17] : memref<128x128xf32, #tpu.memory_space<vmem>>, vector<128x128xf32>
    %cst_18 = arith.constant dense<0.000000e+00> : vector<128x128xf32>
    %33 = tpu.matmul %31, %32, %cst_18 {dimension_numbers = #tpu.dot_dimension_numbers<[1], [0], [0], [1], [0, 0, 1, 1], [], []>} : vector<128x128xf32>, vector<128x128xf32>, vector<128x128xf32> -> vector<128x128xf32>
    %34 = arith.mulf %30, %33 : vector<128x128xf32>
    %cst_19 = arith.constant dense<0.000000e+00> : vector<128xf32>
    %35 = vector.multi_reduction <add>, %34, %cst_19 [1] : vector<128x128xf32> to vector<128xf32>
    %36 = vector.shape_cast %35 : vector<128xf32> to vector<128x1xf32>
    %37 = math.exp %36 : vector<128x1xf32>
    %c0_20 = arith.constant 0 : index
    %c0_21 = arith.constant 0 : index
    %38 = vector.load %arg7[%c0_20, %c0_21] : memref<128x128xf32, #tpu.memory_space<vmem>>, vector<128x128xf32>
    %cst_22 = arith.constant dense<0.000000e+00> : vector<128x128xf32>
    %39 = tpu.matmul %30, %38, %cst_22 {dimension_numbers = #tpu.dot_dimension_numbers<[1], [0], [0], [1], [0, 0, 1, 1], [], []>} : vector<128x128xf32>, vector<128x128xf32>, vector<128x128xf32> -> vector<128x128xf32>
    %40 = vector.broadcast %37 : vector<128x1xf32> to vector<128x128xf32>
    %41 = arith.mulf %40, %39 : vector<128x128xf32>
    %c0_23 = arith.constant 0 : index
    %c0_24 = arith.constant 0 : index
    %42 = vector.load %arg8[%c0_23, %c0_24] : memref<128x128xf32, #tpu.memory_space<vmem>>, vector<128x128xf32>
    tpu.vector_store %arg8[%c0_23, %c0_24], %41 {strides = array<i32>} : memref<128x128xf32, #tpu.memory_space<vmem>>, vector<128x128xf32>,
    return
  }
  func.func @transform_0(%arg0: i32) -> (i32, i32) {
    %c0_i32 = arith.constant 0 : i32
    %c0_i32_0 = arith.constant 0 : i32
    return %arg0, %c0_i32 : i32, i32
  }
  func.func @transform_1(%arg0: i32) -> (i32, i32) {
    %c0_i32 = arith.constant 0 : i32
    %c0_i32_0 = arith.constant 0 : i32
    %c0_i32_1 = arith.constant 0 : i32
    return %c0_i32, %c0_i32_0 : i32, i32
  }
  func.func @transform_2(%arg0: i32) -> (i32, i32) {
    %c0_i32 = arith.constant 0 : i32
    %c0_i32_0 = arith.constant 0 : i32
    %c0_i32_1 = arith.constant 0 : i32
    return %c0_i32, %c0_i32_0 : i32, i32
  }
  func.func @transform_3(%arg0: i32) -> (i32, i32) {
    %c0_i32 = arith.constant 0 : i32
    %c0_i32_0 = arith.constant 0 : i32
    %c0_i32_1 = arith.constant 0 : i32
    return %c0_i32, %c0_i32_0 : i32, i32
  }
  func.func @transform_4(%arg0: i32) -> (i32, i32) {
    %c0_i32 = arith.constant 0 : i32
    %c0_i32_0 = arith.constant 0 : i32
    %c0_i32_1 = arith.constant 0 : i32
    return %c0_i32, %c0_i32_0 : i32, i32
  }
  func.func @transform_5(%arg0: i32) -> (i32, i32) {
    %c0_i32 = arith.constant 0 : i32
    %c0_i32_0 = arith.constant 0 : i32
    %c0_i32_1 = arith.constant 0 : i32
    return %c0_i32, %c0_i32_0 : i32, i32
  }
  func.func @transform_6(%arg0: i32) -> (i32, i32) {
    %c0_i32 = arith.constant 0 : i32
    %c0_i32_0 = arith.constant 0 : i32
    %c0_i32_1 = arith.constant 0 : i32
    return %c0_i32, %c0_i32_0 : i32, i32
  }
  func.func @transform_7(%arg0: i32) -> (i32, i32) {
    %c0_i32 = arith.constant 0 : i32
    %c0_i32_0 = arith.constant 0 : i32
    return %arg0, %c0_i32 : i32, i32
  }
}

</mosaic_0001>

<llo_original>
// kernel: forward.1
$region0: #{forward.1}
  #allocation0 [shape = 'u32[]', space=smem, size = 0x4, offset = 0x4, fixed_abs, tag = 'smem constant byte address 0x4 - core index']
  #allocation1 [shape = 'u32[144,128]{1,0:T(1,128)}', space=vmem, size = 0x12000, scoped, tag = 'internal scratch']
  %s0 = inlined_call_operand.vmem [shape: f32[256,32], index: 0, kind: input, shape index: {}]
  %s1 = inlined_call_operand.hbm [shape: f32[32,128], index: 1, kind: input, shape index: {}]
  %s2 = inlined_call_operand.vmem [shape: f32[1,128], index: 2, kind: input, shape index: {}]
  %s3 = inlined_call_operand.vmem [shape: bf16[128,128], index: 3, kind: input, shape index: {}]
  %s4 = inlined_call_operand.vmem [shape: f32[128,128], index: 4, kind: input, shape index: {}]
  %s5 = inlined_call_operand.vmem [shape: f32[1,128], index: 5, kind: input, shape index: {}]
  %s6 = inlined_call_operand.vmem [shape: f32[128,128], index: 6, kind: input, shape index: {}]
  %s7 = inlined_call_operand.vmem [shape: f32[256,128], index: 7, kind: output, shape index: {}]
  %s8 = sld [smem:[#allocation0]]
  $region65: #{forward.1} parent=0
    _
  %s10 = ssub.s32 1, %s8
  %s11 = scalar_select 0, %s10, %s8
  $region1: #{forward.1} parent=0
    #allocation2 [shape = 'u8[16384]{0}', space=vmem, size = 0x4000, scoped, tag = 'input window, operand 1, single buffered']
    #allocation3 [shape = 's32[2]{0}', space=sflag, size = 0x8, scoped, tag = 'scoped memory for forward.1']
    %12 = vsyncpa [#allocation3], 0
    loop: start=0, step=1, limit=4
    $region2: #{forward.1} parent=1 // loop_pre_header
      _
    $region3: #{forward.1} parent=1 // loop_header
      %s14 = sphi 0, %s18
      %p15 = scmp.ge.s32.totalorder %s14, 4
      %s24 = sphi 0, %s26
      %s27 = sphi 0, %s24
      %s28 = sphi 0, %s27
      %s44 = sphi 0, %s28
      %s48 = sphi 0, %s48
      %s50 = sphi 0, %s48
      %s51 = sphi 0, %s50
      %s65 = sphi 0, %s51
      %s69 = sphi 0, %s69
      %s71 = sphi 0, %s69
      %s72 = sphi 0, %s71
      %s86 = sphi 0, %s72
      %s90 = sphi 0, %s90
      %s92 = sphi 0, %s90
      %s93 = sphi 0, %s92
      %s107 = sphi 0, %s93
      %s111 = sphi 0, %s111
      %s113 = sphi 0, %s111
      %s114 = sphi 0, %s113
      %s128 = sphi 0, %s114
      %s132 = sphi 0, %s132
      %s134 = sphi 0, %s132
      %s135 = sphi 0, %s134
      %s149 = sphi 0, %s135
      %s153 = sphi 0, %s153
      %s155 = sphi 0, %s153
      %s156 = sphi 0, %s155
      %s170 = sphi 0, %s156
      %s176 = sphi 0, %s178
      %s179 = sphi 0, %s176
      %s180 = sphi 0, %s179
      %s196 = sphi 0, %s180
    $region4: #{forward.1} parent=1 // loop_header_branch
      %17 = sbr.rel (%p15) target = $region8
    $region5: #{forward.1} parent=1 // loop_body
      %s19 = ssub.s32 %s14, 1
      %s20 = ssub.s32 %s14, 2
      %s21 = sadd.s32 %s14, 1
      %s22 = ssub.s32 %s14, %s21
      %p23 = scmp.eq.s32.totalorder %s22, 0
      %s25 = sadd.s32 %s24, 1
      %s26 = scalar_select %p23, %s24, %s25
      %p29 = pneg %p23
      %p30 = scmp.eq.s32.totalorder %s14, 1
      %p31 = por %p29, %p30
      %p32 = scmp.ne.s32.totalorder %s24, %s27
      %p33 = scmp.eq.s32.totalorder %s14, 0
      %p34 = por %p32, %p33
      %p35 = scmp.ne.s32.totalorder %s24, %s27
      %p36 = scmp.eq.s32.totalorder %s19, 1
      %p37 = por %p35, %p36
      %p38 = scmp.ne.s32.totalorder %s27, %s28
      %p39 = scmp.eq.s32.totalorder %s19, 0
      %p40 = por %p38, %p39
      %p41 = scmp.ne.s32.totalorder %s27, %s28
      %p42 = scmp.eq.s32.totalorder %s20, 1
      %p43 = por %p41, %p42
      %p45 = scmp.ne.s32.totalorder %s28, %s44
      %p46 = scmp.eq.s32.totalorder %s20, 0
      %p47 = por %p45, %p46
      %s49 = sadd.s32 %s48, 1
      %p52 = scmp.eq.s32.totalorder %s14, 1
      %p53 = scmp.ne.s32.totalorder %s48, %s50
      %p54 = scmp.eq.s32.totalorder %s14, 0
      %p55 = por %p53, %p54
      %p56 = scmp.ne.s32.totalorder %s48, %s50
      %p57 = scmp.eq.s32.totalorder %s19, 1
      %p58 = por %p56, %p57
      %p59 = scmp.ne.s32.totalorder %s50, %s51
      %p60 = scmp.eq.s32.totalorder %s19, 0
      %p61 = por %p59, %p60
      %p62 = scmp.ne.s32.totalorder %s50, %s51
      %p63 = scmp.eq.s32.totalorder %s20, 1
      %p64 = por %p62, %p63
      %p66 = scmp.ne.s32.totalorder %s51, %s65
      %p67 = scmp.eq.s32.totalorder %s20, 0
      %p68 = por %p66, %p67
      %s70 = sadd.s32 %s69, 1
      %p73 = scmp.eq.s32.totalorder %s14, 1
      %p74 = scmp.ne.s32.totalorder %s69, %s71
      %p75 = scmp.eq.s32.totalorder %s14, 0
      %p76 = por %p74, %p75
      %p77 = scmp.ne.s32.totalorder %s69, %s71
      %p78 = scmp.eq.s32.totalorder %s19, 1
      %p79 = por %p77, %p78
      %p80 = scmp.ne.s32.totalorder %s71, %s72
      %p81 = scmp.eq.s32.totalorder %s19, 0
      %p82 = por %p80, %p81
      %p83 = scmp.ne.s32.totalorder %s71, %s72
      %p84 = scmp.eq.s32.totalorder %s20, 1
      %p85 = por %p83, %p84
      %p87 = scmp.ne.s32.totalorder %s72, %s86
      %p88 = scmp.eq.s32.totalorder %s20, 0
      %p89 = por %p87, %p88
      %s91 = sadd.s32 %s90, 1
      %p94 = scmp.eq.s32.totalorder %s14, 1
      %p95 = scmp.ne.s32.totalorder %s90, %s92
      %p96 = scmp.eq.s32.totalorder %s14, 0
      %p97 = por %p95, %p96
      %p98 = scmp.ne.s32.totalorder %s90, %s92
      %p99 = scmp.eq.s32.totalorder %s19, 1
      %p100 = por %p98, %p99
      %p101 = scmp.ne.s32.totalorder %s92, %s93
      %p102 = scmp.eq.s32.totalorder %s19, 0
      %p103 = por %p101, %p102
      %p104 = scmp.ne.s32.totalorder %s92, %s93
      %p105 = scmp.eq.s32.totalorder %s20, 1
      %p106 = por %p104, %p105
      %p108 = scmp.ne.s32.totalorder %s93, %s107
      %p109 = scmp.eq.s32.totalorder %s20, 0
      %p110 = por %p108, %p109
      %s112 = sadd.s32 %s111, 1
      %p115 = scmp.eq.s32.totalorder %s14, 1
      %p116 = scmp.ne.s32.totalorder %s111, %s113
      %p117 = scmp.eq.s32.totalorder %s14, 0
      %p118 = por %p116, %p117
      %p119 = scmp.ne.s32.totalorder %s111, %s113
      %p120 = scmp.eq.s32.totalorder %s19, 1
      %p121 = por %p119, %p120
      %p122 = scmp.ne.s32.totalorder %s113, %s114
      %p123 = scmp.eq.s32.totalorder %s19, 0
      %p124 = por %p122, %p123
      %p125 = scmp.ne.s32.totalorder %s113, %s114
      %p126 = scmp.eq.s32.totalorder %s20, 1
      %p127 = por %p125, %p126
      %p129 = scmp.ne.s32.totalorder %s114, %s128
      %p130 = scmp.eq.s32.totalorder %s20, 0
      %p131 = por %p129, %p130
      %s133 = sadd.s32 %s132, 1
      %p136 = scmp.eq.s32.totalorder %s14, 1
      %p137 = scmp.ne.s32.totalorder %s132, %s134
      %p138 = scmp.eq.s32.totalorder %s14, 0
      %p139 = por %p137, %p138
      %p140 = scmp.ne.s32.totalorder %s132, %s134
      %p141 = scmp.eq.s32.totalorder %s19, 1
      %p142 = por %p140, %p141
      %p143 = scmp.ne.s32.totalorder %s134, %s135
      %p144 = scmp.eq.s32.totalorder %s19, 0
      %p145 = por %p143, %p144
      %p146 = scmp.ne.s32.totalorder %s134, %s135
      %p147 = scmp.eq.s32.totalorder %s20, 1
      %p148 = por %p146, %p147
      %p150 = scmp.ne.s32.totalorder %s135, %s149
      %p151 = scmp.eq.s32.totalorder %s20, 0
      %p152 = por %p150, %p151
      %s154 = sadd.s32 %s153, 1
      %p157 = scmp.eq.s32.totalorder %s14, 1
      %p158 = scmp.ne.s32.totalorder %s153, %s155
      %p159 = scmp.eq.s32.totalorder %s14, 0
      %p160 = por %p158, %p159
      %p161 = scmp.ne.s32.totalorder %s153, %s155
      %p162 = scmp.eq.s32.totalorder %s19, 1
      %p163 = por %p161, %p162
      %p164 = scmp.ne.s32.totalorder %s155, %s156
      %p165 = scmp.eq.s32.totalorder %s19, 0
      %p166 = por %p164, %p165
      %p167 = scmp.ne.s32.totalorder %s155, %s156
      %p168 = scmp.eq.s32.totalorder %s20, 1
      %p169 = por %p167, %p168
      %p171 = scmp.ne.s32.totalorder %s156, %s170
      %p172 = scmp.eq.s32.totalorder %s20, 0
      %p173 = por %p171, %p172
      %s174 = ssub.s32 %s14, %s21
      %p175 = scmp.eq.s32.totalorder %s174, 0
      %s177 = sadd.s32 %s176, 1
      %s178 = scalar_select %p175, %s176, %s177
      %p181 = pneg %p175
      %p182 = scmp.eq.s32.totalorder %s14, 1
      %p183 = por %p181, %p182
      %p184 = scmp.ne.s32.totalorder %s176, %s179
      %p185 = scmp.eq.s32.totalorder %s14, 0
      %p186 = por %p184, %p185
      %p187 = scmp.ne.s32.totalorder %s176, %s179
      %p188 = scmp.eq.s32.totalorder %s19, 1
      %p189 = por %p187, %p188
      %p190 = scmp.ne.s32.totalorder %s179, %s180
      %p191 = scmp.eq.s32.totalorder %s19, 0
      %p192 = por %p190, %p191
      %p193 = scmp.ne.s32.totalorder %s179, %s180
      %p194 = scmp.eq.s32.totalorder %s20, 1
      %p195 = por %p193, %p194
      %p197 = scmp.ne.s32.totalorder %s180, %s196
      %p198 = scmp.eq.s32.totalorder %s20, 0
      %p199 = por %p197, %p198
      %p200 = scmp.le.s32.totalorder 1, %s14
      %p201 = scmp.lt.s32.totalorder %s14, 3
      %p202 = pnand %p200, %p201
      %p203 = pneg %p202
      // Predicated region
      $region9: #{forward.1} parent=5 // pred_check
        _
      $region10: #{forward.1} parent=5 // pred_check_branch
        %205 = sbr.rel (%p202) target = $region12
      $region11: #{forward.1} parent=5 // pred_region
        %s206 = ssub.s32 %s14, 1
        // Predicated region
        $region13: #{forward.1} parent=11 // pred_check
          %p207 = pneg %p61
        $region14: #{forward.1} parent=11 // pred_check_branch
          %209 = sbr.rel (%p207) target = $region16
        $region15: #{forward.1} parent=11 // pred_region
          %s211 = ssub.s32 512, 512
          %212 = vsyncadd [#allocation3], %s211
          %s213 = sshll.u32 [#allocation2], 4
          %s214 = int_to_ptr.vmem [resolvable:$true] %s213
          %219 = dma.hbm_to_vmem [thread:$0]  %s1, 512, %s214, [#allocation3], 128, 128, 8
        $region16: #{forward.1} parent=11 // pred_fallthru
          _
        // Predicated region
        $region17: #{forward.1} parent=11 // pred_check
          %p220 = pneg %p82
        $region18: #{forward.1} parent=11 // pred_check_branch
          %222 = sbr.rel (%p220) target = $region20
        $region19: #{forward.1} parent=11 // pred_region
          _
        $region20: #{forward.1} parent=11 // pred_fallthru
          _
        // Predicated region
        $region21: #{forward.1} parent=11 // pred_check
          %p223 = pneg %p103
        $region22: #{forward.1} parent=11 // pred_check_branch
          %225 = sbr.rel (%p223) target = $region24
        $region23: #{forward.1} parent=11 // pred_region
          _
        $region24: #{forward.1} parent=11 // pred_fallthru
          _
        // Predicated region
        $region25: #{forward.1} parent=11 // pred_check
          %p226 = pneg %p124
        $region26: #{forward.1} parent=11 // pred_check_branch
          %228 = sbr.rel (%p226) target = $region28
        $region27: #{forward.1} parent=11 // pred_region
          _
        $region28: #{forward.1} parent=11 // pred_fallthru
          _
        // Predicated region
        $region29: #{forward.1} parent=11 // pred_check
          %p229 = pneg %p145
        $region30: #{forward.1} parent=11 // pred_check_branch
          %231 = sbr.rel (%p229) target = $region32
        $region31: #{forward.1} parent=11 // pred_region
          _
        $region32: #{forward.1} parent=11 // pred_fallthru
          _
        // Predicated region
        $region33: #{forward.1} parent=11 // pred_check
          %p232 = pneg %p166
        $region34: #{forward.1} parent=11 // pred_check_branch
          %234 = sbr.rel (%p232) target = $region36
        $region35: #{forward.1} parent=11 // pred_region
          _
        $region36: #{forward.1} parent=11 // pred_fallthru
          _
      $region12: #{forward.1} parent=5 // pred_fallthru
        _
      %p235 = scmp.lt.s32.totalorder %s14, 2
      // Predicated region
      $region37: #{forward.1} parent=5 // pred_check
        %p236 = pneg %p235
      $region38: #{forward.1} parent=5 // pred_check_branch
        %238 = sbr.rel (%p236) target = $region40
      $region39: #{forward.1} parent=5 // pred_region
        // Predicated region
        $region41: #{forward.1} parent=39 // pred_check
          %p239 = pneg %p34
        $region42: #{forward.1} parent=39 // pred_check_branch
          %241 = sbr.rel (%p239) target = $region44
        $region43: #{forward.1} parent=39 // pred_region
          %s242 = smul.u32 16, %s14
          %p243 = scmp.lt.s32.totalorder %s242, 31
          %s244 = scalar_select %p243, %s242, 31
          %s245 = smul.addr %s244, 8
          %s246 = scalar_lea.vmem %s0, %s245
          %s247 = smul.u32 16, %s14
        $region44: #{forward.1} parent=39 // pred_fallthru
          _
      $region40: #{forward.1} parent=5 // pred_fallthru
        _
      %p248 = scmp.le.s32.totalorder 1, %s14
      %p249 = scmp.lt.s32.totalorder %s14, 3
      %p250 = pnand %p248, %p249
      %p251 = pneg %p250
      // Predicated region
      $region45: #{forward.1} parent=5 // pred_check
        _
      $region46: #{forward.1} parent=5 // pred_check_branch
        %253 = sbr.rel (%p250) target = $region48
      $region47: #{forward.1} parent=5 // pred_region
        %s254 = ssub.s32 %s14, 1
        // Predicated region
        $region49: #{forward.1} parent=47 // pred_check
          %p255 = pneg %p61
        $region50: #{forward.1} parent=47 // pred_check_branch
          %257 = sbr.rel (%p255) target = $region52
        $region51: #{forward.1} parent=47 // pred_region
          %258 = dma.done [#allocation3], 512
        $region52: #{forward.1} parent=47 // pred_fallthru
          _
        %s259 = smul.u32 16, %s19
        %p260 = scmp.lt.s32.totalorder %s259, 31
        %s261 = scalar_select %p260, %s259, 31
        %s262 = smul.addr %s261, 8
        %s263 = scalar_lea.vmem %s0, %s262
        %p264 = pneg %p40
        %p265 = pneg %p37
        %p266 = pneg %p61
        %p267 = pneg %p58
        %p268 = pneg %p82
        %p269 = pneg %p79
        %p270 = pneg %p103
        %p271 = pneg %p100
        %p272 = pneg %p124
        %p273 = pneg %p121
        %p274 = pneg %p145
        %p275 = pneg %p142
        %p276 = pneg %p166
        %p277 = pneg %p163
        %p278 = pneg %p192
        %p279 = pneg %p189
        %s280 = smul.u32 16, %s19
        %p281 = scmp.lt.s32.totalorder %s280, 31
        %s282 = scalar_select %p281, %s280, 31
        %s283 = smul.addr %s282, 8
        %s284 = scalar_lea.vmem %s7, %s283
        %s285 = smul.u32 16, %s19
        %p286 = scmp.lt.s32.totalorder %s285, 31
        %s287 = scalar_select %p286, %s285, 31
        %s288 = smul.addr %s287, 8
        %s289 = scalar_lea.vmem %s0, %s288
        %s290 = smul.u32 16, %s19
        %s291 = smul.u32 16, %s19
        %p292 = scmp.lt.s32.totalorder %s291, 31
        %s293 = scalar_select %p292, %s291, 31
        %s294 = smul.addr %s293, 8
        %s295 = scalar_lea.vmem %s7, %s294
        %s296 = smul.u32 16, %s19
        %v298 = vld [vmem:[%s289] sm:$0xff]
        %v299 = vld [vmem:[%s289 + $0x8] sm:$0xff]
        %v300 = vld [vmem:[%s289 + $0x10] sm:$0xff]
        %v301 = vld [vmem:[%s289 + $0x18] sm:$0xff]
        %v302 = vld [vmem:[%s289 + $0x20] sm:$0xff]
        %v303 = vld [vmem:[%s289 + $0x28] sm:$0xff]
        %v304 = vld [vmem:[%s289 + $0x30] sm:$0xff]
        %v305 = vld [vmem:[%s289 + $0x38] sm:$0xff]
        %v306 = vld [vmem:[%s289 + $0x40] sm:$0xff]
        %v307 = vld [vmem:[%s289 + $0x48] sm:$0xff]
        %v308 = vld [vmem:[%s289 + $0x50] sm:$0xff]
        %v309 = vld [vmem:[%s289 + $0x58] sm:$0xff]
        %v310 = vld [vmem:[%s289 + $0x60] sm:$0xff]
        %v311 = vld [vmem:[%s289 + $0x68] sm:$0xff]
        %v312 = vld [vmem:[%s289 + $0x70] sm:$0xff]
        %v313 = vld [vmem:[%s289 + $0x78] sm:$0xff]
        %v314 = vld [vmem:[#allocation2] sm:$0xff]
        %v315 = vld [vmem:[#allocation2 + $0x8] sm:$0xff]
        %v316 = vld [vmem:[#allocation2 + $0x10] sm:$0xff]
        %v317 = vld [vmem:[#allocation2 + $0x18] sm:$0xff]
        %v318 = vld [vmem:[%s2] sm:$0x1]
        %v320 = vlaneseq
        %v321 = vshrl.u32 %v320, 7
        %v322 = vsub.s32 0, %v321
        %v323 = vrot.slane %v318, %v322
        %vm325 = vcmask 261120
        %v327 = vsel %vm325, %v298, 0
        %v330 = vsel %vm325, %v299, 0
        %v333 = vsel %vm325, %v300, 0
        %v336 = vsel %vm325, %v301, 0
        %v339 = vsel %vm325, %v302, 0
        %v342 = vsel %vm325, %v303, 0
        %v345 = vsel %vm325, %v304, 0
        %v348 = vsel %vm325, %v305, 0
        %v351 = vsel %vm325, %v306, 0
        %v354 = vsel %vm325, %v307, 0
        %v357 = vsel %vm325, %v308, 0
        %v360 = vsel %vm325, %v309, 0
        %v363 = vsel %vm325, %v310, 0
        %v366 = vsel %vm325, %v311, 0
        %v369 = vsel %vm325, %v312, 0
        %v372 = vsel %vm325, %v313, 0
        %374 = vmatprep.subr.mxu0 0.0
        %375 = vmatpush1.msra.mxu0 %v314
        %376 = vmatprep.subr.mxu0 0.0
        %377 = vmatpush1.msra.mxu0 %v315
        %378 = vmatprep.subr.mxu0 0.0
        %379 = vmatpush1.msra.mxu0 %v316
        %380 = vmatprep.subr.mxu0 0.0
        %381 = vmatpush1.msra.mxu0 %v317
        %382 = vmatprep.subr.mxu0 0.0
        %383 = vmatpush1.msra.mxu0 0.0
        %384 = vmatprep.subr.mxu0 0.0
        %385 = vmatpush1.msra.mxu0 0.0
        %386 = vmatprep.subr.mxu0 0.0
        %387 = vmatpush1.msra.mxu0 0.0
        %388 = vmatprep.subr.mxu0 0.0
        %389 = vmatpush1.msra.mxu0 0.0
        %390 = vmatprep.subr.mxu0 0.0
        %391 = vmatpush1.msra.mxu0 0.0
        %392 = vmatprep.subr.mxu0 0.0
        %393 = vmatpush1.msra.mxu0 0.0
        %394 = vmatprep.subr.mxu0 0.0
        %395 = vmatpush1.msra.mxu0 0.0
        %396 = vmatprep.subr.mxu0 0.0
        %397 = vmatpush1.msra.mxu0 0.0
        %398 = vmatprep.subr.mxu0 0.0
        %399 = vmatpush1.msra.mxu0 0.0
        %400 = vmatprep.subr.mxu0 0.0
        %401 = vmatpush1.msra.mxu0 0.0
        %402 = vmatprep.subr.mxu0 0.0
        %403 = vmatpush1.msra.mxu0 0.0
        %404 = vmatprep.subr.mxu0 0.0
        %405 = vmatpush1.msra.mxu0 0.0
        %406 = vmatprep.subr.mxu0 0.0
        %407 = vmatpush1.msra.mxu0 0.0
        %408 = vmatprep.subr.mxu0 0.0
        %409 = vmatpush1.msra.mxu0 0.0
        %410 = vmatprep.subr.mxu0 0.0
        %411 = vmatpush1.msra.mxu0 0.0
        %412 = vmatprep.subr.mxu0 0.0
        %413 = vmatpush1.msra.mxu0 0.0
        %414 = vmatprep.subr.mxu0 0.0
        %415 = vmatpush1.msra.mxu0 0.0
        %416 = vmatprep.subr.mxu0 0.0
        %417 = vmatpush1.msra.mxu0 0.0
        %418 = vmatprep.subr.mxu0 0.0
        %419 = vmatpush1.msra.mxu0 0.0
        %420 = vmatprep.subr.mxu0 0.0
        %421 = vmatpush1.msra.mxu0 0.0
        %422 = vmatprep.subr.mxu0 0.0
        %423 = vmatpush1.msra.mxu0 0.0
        %424 = vmatprep.subr.mxu0 0.0
        %425 = vmatpush1.msra.mxu0 0.0
        %426 = vmatprep.subr.mxu0 0.0
        %427 = vmatpush1.msra.mxu0 0.0
        %428 = vmatprep.subr.mxu0 0.0
        %429 = vmatpush1.msra.mxu0 0.0
        %430 = vmatprep.subr.mxu0 0.0
        %431 = vmatpush1.msra.mxu0 0.0
        %432 = vmatprep.subr.mxu0 0.0
        %433 = vmatpush1.msra.mxu0 0.0
        %434 = vmatprep.subr.mxu0 0.0
        %435 = vmatpush1.msra.mxu0 0.0
        %436 = vmatprep.subr.mxu0 0.0
        %437 = vmatpush1.msra.mxu0 0.0
        %438 = vmatprep.mubr.f32.mxu0 0.0
        %439 = vmatmul.mubr.f32.gmra.mrb[0].mxu0 %v327
        %v440 = vpop.f32.mrb[0].mxu0
        %v441 = vadd.f32 %v323, %v440
        %v442 = vpop.f32.mrb[0].mxu0
        %443 = vmatprep.mubr.f32.mxu0 0.0
        %444 = vmatmul.mubr.f32.gmra.mrb[0].mxu0 %v330
        %v445 = vpop.f32.mrb[0].mxu0
        %v446 = vadd.f32 %v323, %v445
        %v447 = vpop.f32.mrb[0].mxu0
        %448 = vmatprep.mubr.f32.mxu0 0.0
        %449 = vmatmul.mubr.f32.gmra.mrb[0].mxu0 %v333
        %v450 = vpop.f32.mrb[0].mxu0
        %v451 = vadd.f32 %v323, %v450
        %v452 = vpop.f32.mrb[0].mxu0
        %453 = vmatprep.mubr.f32.mxu0 0.0
        %454 = vmatmul.mubr.f32.gmra.mrb[0].mxu0 %v336
        %v455 = vpop.f32.mrb[0].mxu0
        %v456 = vadd.f32 %v323, %v455
        %v457 = vpop.f32.mrb[0].mxu0
        %458 = vmatprep.mubr.f32.mxu0 0.0
        %459 = vmatmul.mubr.f32.gmra.mrb[0].mxu0 %v339
        %v460 = vpop.f32.mrb[0].mxu0
        %v461 = vadd.f32 %v323, %v460
        %v462 = vpop.f32.mrb[0].mxu0
        %463 = vmatprep.mubr.f32.mxu0 0.0
        %464 = vmatmul.mubr.f32.gmra.mrb[0].mxu0 %v342
        %v465 = vpop.f32.mrb[0].mxu0
        %v466 = vadd.f32 %v323, %v465
        %v467 = vpop.f32.mrb[0].mxu0
        %468 = vmatprep.mubr.f32.mxu0 0.0
        %469 = vmatmul.mubr.f32.gmra.mrb[0].mxu0 %v345
        %v470 = vpop.f32.mrb[0].mxu0
        %v471 = vadd.f32 %v323, %v470
        %v472 = vpop.f32.mrb[0].mxu0
        %473 = vmatprep.mubr.f32.mxu0 0.0
        %474 = vmatmul.mubr.f32.gmra.mrb[0].mxu0 %v348
        %v475 = vpop.f32.mrb[0].mxu0
        %v476 = vadd.f32 %v323, %v475
        %v477 = vpop.f32.mrb[0].mxu0
        %478 = vmatprep.mubr.f32.mxu0 0.0
        %479 = vmatmul.mubr.f32.gmra.mrb[0].mxu0 %v351
        %v480 = vpop.f32.mrb[0].mxu0
        %v481 = vadd.f32 %v323, %v480
        %v482 = vpop.f32.mrb[0].mxu0
        %483 = vmatprep.mubr.f32.mxu0 0.0
        %484 = vmatmul.mubr.f32.gmra.mrb[0].mxu0 %v354
        %v485 = vpop.f32.mrb[0].mxu0
        %v486 = vadd.f32 %v323, %v485
        %v487 = vpop.f32.mrb[0].mxu0
        %488 = vmatprep.mubr.f32.mxu0 0.0
        %489 = vmatmul.mubr.f32.gmra.mrb[0].mxu0 %v357
        %v490 = vpop.f32.mrb[0].mxu0
        %v491 = vadd.f32 %v323, %v490
        %v492 = vpop.f32.mrb[0].mxu0
        %493 = vmatprep.mubr.f32.mxu0 0.0
        %494 = vmatmul.mubr.f32.gmra.mrb[0].mxu0 %v360
        %v495 = vpop.f32.mrb[0].mxu0
        %v496 = vadd.f32 %v323, %v495
        %v497 = vpop.f32.mrb[0].mxu0
        %498 = vmatprep.mubr.f32.mxu0 0.0
        %499 = vmatmul.mubr.f32.gmra.mrb[0].mxu0 %v363
        %v500 = vpop.f32.mrb[0].mxu0
        %v501 = vadd.f32 %v323, %v500
        %v502 = vpop.f32.mrb[0].mxu0
        %503 = vmatprep.mubr.f32.mxu0 0.0
        %504 = vmatmul.mubr.f32.gmra.mrb[0].mxu0 %v366
        %v505 = vpop.f32.mrb[0].mxu0
        %v506 = vadd.f32 %v323, %v505
        %v507 = vpop.f32.mrb[0].mxu0
        %508 = vmatprep.mubr.f32.mxu0 0.0
        %509 = vmatmul.mubr.f32.gmra.mrb[0].mxu0 %v369
        %v510 = vpop.f32.mrb[0].mxu0
        %v511 = vadd.f32 %v323, %v510
        %v512 = vpop.f32.mrb[0].mxu0
        %513 = vmatprep.mubr.f32.mxu0 0.0
        %514 = vmatmul.mubr.f32.gmra.mrb[0].mxu0 %v372
        %v515 = vpop.f32.mrb[0].mxu0
        %v516 = vadd.f32 %v323, %v515
        %v517 = vpop.f32.mrb[0].mxu0
        %518 = vdwg.mxu0
        %v519 = vxor.u32 %v441, 2147483648
        %v520 = vxor.u32 %v446, 2147483648
        %v521 = vxor.u32 %v451, 2147483648
        %v522 = vxor.u32 %v456, 2147483648
        %v523 = vxor.u32 %v461, 2147483648
        %v524 = vxor.u32 %v466, 2147483648
        %v525 = vxor.u32 %v471, 2147483648
        %v526 = vxor.u32 %v476, 2147483648
        %v527 = vxor.u32 %v481, 2147483648
        %v528 = vxor.u32 %v486, 2147483648
        %v529 = vxor.u32 %v491, 2147483648
        %v530 = vxor.u32 %v496, 2147483648
        %v531 = vxor.u32 %v501, 2147483648
        %v532 = vxor.u32 %v506, 2147483648
        %v533 = vxor.u32 %v511, 2147483648
        %v534 = vxor.u32 %v516, 2147483648
        %v535 = vmul.f32 %v519, 1.442695
        %v536 = vpow.pop %v535
        %v537 = vmul.f32 %v520, 1.442695
        %v538 = vpow.pop %v537
        %v539 = vmul.f32 %v521, 1.442695
        %v540 = vpow.pop %v539
        %v541 = vmul.f32 %v522, 1.442695
        %v542 = vpow.pop %v541
        %v543 = vmul.f32 %v523, 1.442695
        %v544 = vpow.pop %v543
        %v545 = vmul.f32 %v524, 1.442695
        %v546 = vpow.pop %v545
        %v547 = vmul.f32 %v525, 1.442695
        %v548 = vpow.pop %v547
        %v549 = vmul.f32 %v526, 1.442695
        %v550 = vpow.pop %v549
        %v551 = vmul.f32 %v527, 1.442695
        %v552 = vpow.pop %v551
        %v553 = vmul.f32 %v528, 1.442695
        %v554 = vpow.pop %v553
        %v555 = vmul.f32 %v529, 1.442695
        %v556 = vpow.pop %v555
        %v557 = vmul.f32 %v530, 1.442695
        %v558 = vpow.pop %v557
        %v559 = vmul.f32 %v531, 1.442695
        %v560 = vpow.pop %v559
        %v561 = vmul.f32 %v532, 1.442695
        %v562 = vpow.pop %v561
        %v563 = vmul.f32 %v533, 1.442695
        %v564 = vpow.pop %v563
        %v565 = vmul.f32 %v534, 1.442695
        %v566 = vpow.pop %v565
        %v567 = vadd.f32 %v536, 1.0
        %v568 = vadd.f32 %v538, 1.0
        %v569 = vadd.f32 %v540, 1.0
        %v570 = vadd.f32 %v542, 1.0
        %v571 = vadd.f32 %v544, 1.0
        %v572 = vadd.f32 %v546, 1.0
        %v573 = vadd.f32 %v548, 1.0
        %v574 = vadd.f32 %v550, 1.0
        %v575 = vadd.f32 %v552, 1.0
        %v576 = vadd.f32 %v554, 1.0
        %v577 = vadd.f32 %v556, 1.0
        %v578 = vadd.f32 %v558, 1.0
        %v579 = vadd.f32 %v560, 1.0
        %v580 = vadd.f32 %v562, 1.0
        %v581 = vadd.f32 %v564, 1.0
        %v582 = vadd.f32 %v566, 1.0
        %v583 = vrcp.pop %v567
        %v584 = vmul.f32 1.0, %v583
        %v585 = vrcp.pop %v568
        %v586 = vmul.f32 1.0, %v585
        %v587 = vrcp.pop %v569
        %v588 = vmul.f32 1.0, %v587
        %v589 = vrcp.pop %v570
        %v590 = vmul.f32 1.0, %v589
        %v591 = vrcp.pop %v571
        %v592 = vmul.f32 1.0, %v591
        %v593 = vrcp.pop %v572
        %v594 = vmul.f32 1.0, %v593
        %v595 = vrcp.pop %v573
        %v596 = vmul.f32 1.0, %v595
        %v597 = vrcp.pop %v574
        %v598 = vmul.f32 1.0, %v597
        %v599 = vrcp.pop %v575
        %v600 = vmul.f32 1.0, %v599
        %v601 = vrcp.pop %v576
        %v602 = vmul.f32 1.0, %v601
        %v603 = vrcp.pop %v577
        %v604 = vmul.f32 1.0, %v603
        %v605 = vrcp.pop %v578
        %v606 = vmul.f32 1.0, %v605
        %v607 = vrcp.pop %v579
        %v608 = vmul.f32 1.0, %v607
        %v609 = vrcp.pop %v580
        %v610 = vmul.f32 1.0, %v609
        %v611 = vrcp.pop %v581
        %v612 = vmul.f32 1.0, %v611
        %v613 = vrcp.pop %v582
        %v614 = vmul.f32 1.0, %v613
        %vm615 = vcmp.ge.f32.partialorder %v584, 0.5
        %vm616 = vcmp.ge.f32.partialorder %v586, 0.5
        %vm617 = vcmp.ge.f32.partialorder %v588, 0.5
        %vm618 = vcmp.ge.f32.partialorder %v590, 0.5
        %vm619 = vcmp.ge.f32.partialorder %v592, 0.5
        %vm620 = vcmp.ge.f32.partialorder %v594, 0.5
        %vm621 = vcmp.ge.f32.partialorder %v596, 0.5
        %vm622 = vcmp.ge.f32.partialorder %v598, 0.5
        %vm623 = vcmp.ge.f32.partialorder %v600, 0.5
        %vm624 = vcmp.ge.f32.partialorder %v602, 0.5
        %vm625 = vcmp.ge.f32.partialorder %v604, 0.5
        %vm626 = vcmp.ge.f32.partialorder %v606, 0.5
        %vm627 = vcmp.ge.f32.partialorder %v608, 0.5
        %vm628 = vcmp.ge.f32.partialorder %v610, 0.5
        %vm629 = vcmp.ge.f32.partialorder %v612, 0.5
        %vm630 = vcmp.ge.f32.partialorder %v614, 0.5
        %v631 = vsub.f32 %v584, 0.5
        %v632 = vsub.f32 %v586, 0.5
        %v633 = vsub.f32 %v588, 0.5
        %v634 = vsub.f32 %v590, 0.5
        %v635 = vsub.f32 %v592, 0.5
        %v636 = vsub.f32 %v594, 0.5
        %v637 = vsub.f32 %v596, 0.5
        %v638 = vsub.f32 %v598, 0.5
        %v639 = vsub.f32 %v600, 0.5
        %v640 = vsub.f32 %v602, 0.5
        %v641 = vsub.f32 %v604, 0.5
        %v642 = vsub.f32 %v606, 0.5
        %v643 = vsub.f32 %v608, 0.5
        %v644 = vsub.f32 %v610, 0.5
        %v645 = vsub.f32 %v612, 0.5
        %v646 = vsub.f32 %v614, 0.5
        %v647 = vand.u32 2147483647, %v631
        %v648 = vand.u32 2147483647, %v632
        %v649 = vand.u32 2147483647, %v633
        %v650 = vand.u32 2147483647, %v634
        %v651 = vand.u32 2147483647, %v635
        %v652 = vand.u32 2147483647, %v636
        %v653 = vand.u32 2147483647, %v637
        %v654 = vand.u32 2147483647, %v638
        %v655 = vand.u32 2147483647, %v639
        %v656 = vand.u32 2147483647, %v640
        %v657 = vand.u32 2147483647, %v641
        %v658 = vand.u32 2147483647, %v642
        %v659 = vand.u32 2147483647, %v643
        %v660 = vand.u32 2147483647, %v644
        %v661 = vand.u32 2147483647, %v645
        %v662 = vand.u32 2147483647, %v646
        %v663 = vadd.f32 %v647, 0.5
        %v664 = vadd.f32 %v648, 0.5
        %v665 = vadd.f32 %v649, 0.5
        %v666 = vadd.f32 %v650, 0.5
        %v667 = vadd.f32 %v651, 0.5
        %v668 = vadd.f32 %v652, 0.5
        %v669 = vadd.f32 %v653, 0.5
        %v670 = vadd.f32 %v654, 0.5
        %v671 = vadd.f32 %v655, 0.5
        %v672 = vadd.f32 %v656, 0.5
        %v673 = vadd.f32 %v657, 0.5
        %v674 = vadd.f32 %v658, 0.5
        %v675 = vadd.f32 %v659, 0.5
        %v676 = vadd.f32 %v660, 0.5
        %v677 = vadd.f32 %v661, 0.5
        %v678 = vadd.f32 %v662, 0.5
        %v679 = vsel %vm615, 1, 0
        %v680 = vsel %vm616, 1, 0
        %v681 = vsel %vm617, 1, 0
        %v682 = vsel %vm618, 1, 0
        %v683 = vsel %vm619, 1, 0
        %v684 = vsel %vm620, 1, 0
        %v685 = vsel %vm621, 1, 0
        %v686 = vsel %vm622, 1, 0
        %v687 = vsel %vm623, 1, 0
        %v688 = vsel %vm624, 1, 0
        %v689 = vsel %vm625, 1, 0
        %v690 = vsel %vm626, 1, 0
        %v691 = vsel %vm627, 1, 0
        %v692 = vsel %vm628, 1, 0
        %v693 = vsel %vm629, 1, 0
        %v694 = vsel %vm630, 1, 0
        %v695 = vcvt.s32.f32 %v679
        %v696 = vcvt.s32.f32 %v680
        %v697 = vcvt.s32.f32 %v681
        %v698 = vcvt.s32.f32 %v682
        %v699 = vcvt.s32.f32 %v683
        %v700 = vcvt.s32.f32 %v684
        %v701 = vcvt.s32.f32 %v685
        %v702 = vcvt.s32.f32 %v686
        %v703 = vcvt.s32.f32 %v687
        %v704 = vcvt.s32.f32 %v688
        %v705 = vcvt.s32.f32 %v689
        %v706 = vcvt.s32.f32 %v690
        %v707 = vcvt.s32.f32 %v691
        %v708 = vcvt.s32.f32 %v692
        %v709 = vcvt.s32.f32 %v693
        %v710 = vcvt.s32.f32 %v694
        %v711 = vpack.c.bf16 %v696, %v695
        %v712 = vpack.c.bf16 %v698, %v697
        %v713 = vpack.c.bf16 %v700, %v699
        %v714 = vpack.c.bf16 %v702, %v701
        %v715 = vpack.c.bf16 %v704, %v703
        %v716 = vpack.c.bf16 %v706, %v705
        %v717 = vpack.c.bf16 %v708, %v707
        %v718 = vpack.c.bf16 %v710, %v709
        %v719 = vld [vmem:[%s3] sm:$0xf]
        %v720 = vld [vmem:[%s3 + $0x4] sm:$0xf]
        %v721 = vld [vmem:[%s3 + $0x8] sm:$0xf]
        %v722 = vld [vmem:[%s3 + $0xc] sm:$0xf]
        %v723 = vld [vmem:[%s3 + $0x10] sm:$0xf]
        %v724 = vld [vmem:[%s3 + $0x14] sm:$0xf]
        %v725 = vld [vmem:[%s3 + $0x18] sm:$0xf]
        %v726 = vld [vmem:[%s3 + $0x1c] sm:$0xf]
        %v727 = vld [vmem:[%s3 + $0x20] sm:$0xf]
        %v728 = vld [vmem:[%s3 + $0x24] sm:$0xf]
        %v729 = vld [vmem:[%s3 + $0x28] sm:$0xf]
        %v730 = vld [vmem:[%s3 + $0x2c] sm:$0xf]
        %v731 = vld [vmem:[%s3 + $0x30] sm:$0xf]
        %v732 = vld [vmem:[%s3 + $0x34] sm:$0xf]
        %v733 = vld [vmem:[%s3 + $0x38] sm:$0xf]
        %v734 = vld [vmem:[%s3 + $0x3c] sm:$0xf]
        %v735 = vld [vmem:[%s5] sm:$0x1]
        %v737 = vlaneseq
        %v738 = vshrl.u32 %v737, 7
        %v739 = vsub.s32 0, %v738
        %v740 = vrot.slane %v735, %v739
        %v758 = vunpack.c.l.b16 %v719
        %v759 = vunpack.c.l.b16 %v720
        %v760 = vunpack.c.l.b16 %v721
        %v761 = vunpack.c.l.b16 %v722
        %v762 = vunpack.c.l.b16 %v723
        %v763 = vunpack.c.l.b16 %v724
        %v764 = vunpack.c.l.b16 %v725
        %v765 = vunpack.c.l.b16 %v726
        %v766 = vunpack.c.l.b16 %v727
        %v767 = vunpack.c.l.b16 %v728
        %v768 = vunpack.c.l.b16 %v729
        %v769 = vunpack.c.l.b16 %v730
        %v770 = vunpack.c.l.b16 %v731
        %v771 = vunpack.c.l.b16 %v732
        %v772 = vunpack.c.l.b16 %v733
        %v773 = vunpack.c.l.b16 %v734
        %v774 = vpack.c.b16 %v759, %v758
        %v775 = vpack.c.b16 %v761, %v760
        %v776 = vpack.c.b16 %v763, %v762
        %v777 = vpack.c.b16 %v765, %v764
        %v778 = vpack.c.b16 %v767, %v766
        %v779 = vpack.c.b16 %v769, %v768
        %v780 = vpack.c.b16 %v771, %v770
        %v781 = vpack.c.b16 %v773, %v772
        %790 = vmatprep.subr.bf16.mxu0 0
        %791 = vmatpush1.bf16.msra.mxu0 %v774
        %792 = vmatprep.subr.bf16.mxu0 0
        %793 = vmatpush1.bf16.msra.mxu0 %v775
        %794 = vmatprep.subr.bf16.mxu0 0
        %795 = vmatpush1.bf16.msra.mxu0 %v776
        %796 = vmatprep.subr.bf16.mxu0 0
        %797 = vmatpush1.bf16.msra.mxu0 %v777
        %798 = vmatprep.subr.bf16.mxu0 0
        %799 = vmatpush1.bf16.msra.mxu0 %v778
        %800 = vmatprep.subr.bf16.mxu0 0
        %801 = vmatpush1.bf16.msra.mxu0 %v779
        %802 = vmatprep.subr.bf16.mxu0 0
        %803 = vmatpush1.bf16.msra.mxu0 %v780
        %804 = vmatprep.subr.bf16.mxu0 0
        %805 = vmatpush1.bf16.msra.mxu0 %v781
        %806 = vmatprep.subr.bf16.mxu0 0
        %807 = vmatpush1.bf16.msra.mxu0 0
        %808 = vmatprep.subr.bf16.mxu0 0
        %809 = vmatpush1.bf16.msra.mxu0 0
        %810 = vmatprep.subr.bf16.mxu0 0
        %811 = vmatpush1.bf16.msra.mxu0 0
        %812 = vmatprep.subr.bf16.mxu0 0
        %813 = vmatpush1.bf16.msra.mxu0 0
        %814 = vmatprep.subr.bf16.mxu0 0
        %815 = vmatpush1.bf16.msra.mxu0 0
        %816 = vmatprep.subr.bf16.mxu0 0
        %817 = vmatpush1.bf16.msra.mxu0 0
        %818 = vmatprep.subr.bf16.mxu0 0
        %819 = vmatpush1.bf16.msra.mxu0 0
        %820 = vmatprep.subr.bf16.mxu0 0
        %821 = vmatpush1.bf16.msra.mxu0 0
        %822 = vmatprep.mubr.bf16.mxu0 0
        %823 = vmatmul.mubr.bf16.gmra.mrb[0].mxu0 %v711
        %v824 = vpop.f32.mrb[0].mxu0
        %v825 = vadd.f32 %v740, %v824
        %v826 = vpop.f32.mrb[0].mxu0
        %v827 = vpop.f32.mrb[0].mxu0
        %v828 = vadd.f32 %v740, %v827
        %v829 = vpop.f32.mrb[0].mxu0
        %830 = vmatprep.mubr.bf16.mxu0 0
        %831 = vmatmul.mubr.bf16.gmra.mrb[0].mxu0 %v712
        %v832 = vpop.f32.mrb[0].mxu0
        %v833 = vadd.f32 %v740, %v832
        %v834 = vpop.f32.mrb[0].mxu0
        %v835 = vpop.f32.mrb[0].mxu0
        %v836 = vadd.f32 %v740, %v835
        %v837 = vpop.f32.mrb[0].mxu0
        %838 = vmatprep.mubr.bf16.mxu0 0
        %839 = vmatmul.mubr.bf16.gmra.mrb[0].mxu0 %v713
        %v840 = vpop.f32.mrb[0].mxu0
        %v841 = vadd.f32 %v740, %v840
        %v842 = vpop.f32.mrb[0].mxu0
        %v843 = vpop.f32.mrb[0].mxu0
        %v844 = vadd.f32 %v740, %v843
        %v845 = vpop.f32.mrb[0].mxu0
        %846 = vmatprep.mubr.bf16.mxu0 0
        %847 = vmatmul.mubr.bf16.gmra.mrb[0].mxu0 %v714
        %v848 = vpop.f32.mrb[0].mxu0
        %v849 = vadd.f32 %v740, %v848
        %v850 = vpop.f32.mrb[0].mxu0
        %v851 = vpop.f32.mrb[0].mxu0
        %v852 = vadd.f32 %v740, %v851
        %v853 = vpop.f32.mrb[0].mxu0
        %854 = vmatprep.mubr.bf16.mxu0 0
        %855 = vmatmul.mubr.bf16.gmra.mrb[0].mxu0 %v715
        %v856 = vpop.f32.mrb[0].mxu0
        %v857 = vadd.f32 %v740, %v856
        %v858 = vpop.f32.mrb[0].mxu0
        %v859 = vpop.f32.mrb[0].mxu0
        %v860 = vadd.f32 %v740, %v859
        %v861 = vpop.f32.mrb[0].mxu0
        %862 = vmatprep.mubr.bf16.mxu0 0
        %863 = vmatmul.mubr.bf16.gmra.mrb[0].mxu0 %v716
        %v864 = vpop.f32.mrb[0].mxu0
        %v865 = vadd.f32 %v740, %v864
        %v866 = vpop.f32.mrb[0].mxu0
        %v867 = vpop.f32.mrb[0].mxu0
        %v868 = vadd.f32 %v740, %v867
        %v869 = vpop.f32.mrb[0].mxu0
        %870 = vmatprep.mubr.bf16.mxu0 0
        %871 = vmatmul.mubr.bf16.gmra.mrb[0].mxu0 %v717
        %v872 = vpop.f32.mrb[0].mxu0
        %v873 = vadd.f32 %v740, %v872
        %v874 = vpop.f32.mrb[0].mxu0
        %v875 = vpop.f32.mrb[0].mxu0
        %v876 = vadd.f32 %v740, %v875
        %v877 = vpop.f32.mrb[0].mxu0
        %878 = vmatprep.mubr.bf16.mxu0 0
        %879 = vmatmul.mubr.bf16.gmra.mrb[0].mxu0 %v718
        %v880 = vpop.f32.mrb[0].mxu0
        %v881 = vadd.f32 %v740, %v880
        %v882 = vpop.f32.mrb[0].mxu0
        %v883 = vpop.f32.mrb[0].mxu0
        %v884 = vadd.f32 %v740, %v883
        %v885 = vpop.f32.mrb[0].mxu0
        %886 = vdwg.mxu0
        %vm887 = vcmp.gt.f32.partialorder %v825, 2.5
        %vm888 = vcmp.gt.f32.partialorder %v828, 2.5
        %vm889 = vcmp.gt.f32.partialorder %v833, 2.5
        %vm890 = vcmp.gt.f32.partialorder %v836, 2.5
        %vm891 = vcmp.gt.f32.partialorder %v841, 2.5
        %vm892 = vcmp.gt.f32.partialorder %v844, 2.5
        %vm893 = vcmp.gt.f32.partialorder %v849, 2.5
        %vm894 = vcmp.gt.f32.partialorder %v852, 2.5
        %vm895 = vcmp.gt.f32.partialorder %v857, 2.5
        %vm896 = vcmp.gt.f32.partialorder %v860, 2.5
        %vm897 = vcmp.gt.f32.partialorder %v865, 2.5
        %vm898 = vcmp.gt.f32.partialorder %v868, 2.5
        %vm899 = vcmp.gt.f32.partialorder %v873, 2.5
        %vm900 = vcmp.gt.f32.partialorder %v876, 2.5
        %vm901 = vcmp.gt.f32.partialorder %v881, 2.5
        %vm902 = vcmp.gt.f32.partialorder %v884, 2.5
        %v903 = vsel %vm887, 1, 0
        %v904 = vsel %vm888, 1, 0
        %v905 = vsel %vm889, 1, 0
        %v906 = vsel %vm890, 1, 0
        %v907 = vsel %vm891, 1, 0
        %v908 = vsel %vm892, 1, 0
        %v909 = vsel %vm893, 1, 0
        %v910 = vsel %vm894, 1, 0
        %v911 = vsel %vm895, 1, 0
        %v912 = vsel %vm896, 1, 0
        %v913 = vsel %vm897, 1, 0
        %v914 = vsel %vm898, 1, 0
        %v915 = vsel %vm899, 1, 0
        %v916 = vsel %vm900, 1, 0
        %v917 = vsel %vm901, 1, 0
        %v918 = vsel %vm902, 1, 0
        %v919 = vcvt.s32.f32 %v903
        %v920 = vcvt.s32.f32 %v904
        %v921 = vcvt.s32.f32 %v905
        %v922 = vcvt.s32.f32 %v906
        %v923 = vcvt.s32.f32 %v907
        %v924 = vcvt.s32.f32 %v908
        %v925 = vcvt.s32.f32 %v909
        %v926 = vcvt.s32.f32 %v910
        %v927 = vcvt.s32.f32 %v911
        %v928 = vcvt.s32.f32 %v912
        %v929 = vcvt.s32.f32 %v913
        %v930 = vcvt.s32.f32 %v914
        %v931 = vcvt.s32.f32 %v915
        %v932 = vcvt.s32.f32 %v916
        %v933 = vcvt.s32.f32 %v917
        %v934 = vcvt.s32.f32 %v918
        %v935 = vlog2.pop %v663
        %v936 = vmul.f32 %v935, 0.6931472
        %v937 = vlog2.pop %v664
        %v938 = vmul.f32 %v937, 0.6931472
        %v939 = vlog2.pop %v665
        %v940 = vmul.f32 %v939, 0.6931472
        %v941 = vlog2.pop %v666
        %v942 = vmul.f32 %v941, 0.6931472
        %v943 = vlog2.pop %v667
        %v944 = vmul.f32 %v943, 0.6931472
        %v945 = vlog2.pop %v668
        %v946 = vmul.f32 %v945, 0.6931472
        %v947 = vlog2.pop %v669
        %v948 = vmul.f32 %v947, 0.6931472
        %v949 = vlog2.pop %v670
        %v950 = vmul.f32 %v949, 0.6931472
        %v951 = vlog2.pop %v671
        %v952 = vmul.f32 %v951, 0.6931472
        %v953 = vlog2.pop %v672
        %v954 = vmul.f32 %v953, 0.6931472
        %v955 = vlog2.pop %v673
        %v956 = vmul.f32 %v955, 0.6931472
        %v957 = vlog2.pop %v674
        %v958 = vmul.f32 %v957, 0.6931472
        %v959 = vlog2.pop %v675
        %v960 = vmul.f32 %v959, 0.6931472
        %v961 = vlog2.pop %v676
        %v962 = vmul.f32 %v961, 0.6931472
        %v963 = vlog2.pop %v677
        %v964 = vmul.f32 %v963, 0.6931472
        %v965 = vlog2.pop %v678
        %v966 = vmul.f32 %v965, 0.6931472
        %v967 = vld [vmem:[%s4] sm:$0xff]
        %v968 = vld [vmem:[%s4 + $0x8] sm:$0xff]
        %v969 = vld [vmem:[%s4 + $0x10] sm:$0xff]
        %v970 = vld [vmem:[%s4 + $0x18] sm:$0xff]
        %v971 = vld [vmem:[%s4 + $0x20] sm:$0xff]
        %v972 = vld [vmem:[%s4 + $0x28] sm:$0xff]
        %v973 = vld [vmem:[%s4 + $0x30] sm:$0xff]
        %v974 = vld [vmem:[%s4 + $0x38] sm:$0xff]
        %v975 = vld [vmem:[%s4 + $0x40] sm:$0xff]
        %v976 = vld [vmem:[%s4 + $0x48] sm:$0xff]
        %v977 = vld [vmem:[%s4 + $0x50] sm:$0xff]
        %v978 = vld [vmem:[%s4 + $0x58] sm:$0xff]
        %v979 = vld [vmem:[%s4 + $0x60] sm:$0xff]
        %v980 = vld [vmem:[%s4 + $0x68] sm:$0xff]
        %v981 = vld [vmem:[%s4 + $0x70] sm:$0xff]
        %v982 = vld [vmem:[%s4 + $0x78] sm:$0xff]
        %983 = vmatprep.subr.mxu0 0.0
        %984 = vmatpush1.msra.mxu0 %v967
        %985 = vmatprep.subr.mxu0 0.0
        %986 = vmatpush1.msra.mxu0 %v968
        %987 = vmatprep.subr.mxu0 0.0
        %988 = vmatpush1.msra.mxu0 %v969
        %989 = vmatprep.subr.mxu0 0.0
        %990 = vmatpush1.msra.mxu0 %v970
        %991 = vmatprep.subr.mxu0 0.0
        %992 = vmatpush1.msra.mxu0 %v971
        %993 = vmatprep.subr.mxu0 0.0
        %994 = vmatpush1.msra.mxu0 %v972
        %995 = vmatprep.subr.mxu0 0.0
        %996 = vmatpush1.msra.mxu0 %v973
        %997 = vmatprep.subr.mxu0 0.0
        %998 = vmatpush1.msra.mxu0 %v974
        %999 = vmatprep.subr.mxu0 0.0
        %1000 = vmatpush1.msra.mxu0 %v975
        %1001 = vmatprep.subr.mxu0 0.0
        %1002 = vmatpush1.msra.mxu0 %v976
        %1003 = vmatprep.subr.mxu0 0.0
        %1004 = vmatpush1.msra.mxu0 %v977
        %1005 = vmatprep.subr.mxu0 0.0
        %1006 = vmatpush1.msra.mxu0 %v978
        %1007 = vmatprep.subr.mxu0 0.0
        %1008 = vmatpush1.msra.mxu0 %v979
        %1009 = vmatprep.subr.mxu0 0.0
        %1010 = vmatpush1.msra.mxu0 %v980
        %1011 = vmatprep.subr.mxu0 0.0
        %1012 = vmatpush1.msra.mxu0 %v981
        %1013 = vmatprep.subr.mxu0 0.0
        %1014 = vmatpush1.msra.mxu0 %v982
        %1015 = vmatprep.subr.mxu0 0.0
        %1016 = vmatpush1.msra.mxu0 0.0
        %1017 = vmatprep.subr.mxu0 0.0
        %1018 = vmatpush1.msra.mxu0 0.0
        %1019 = vmatprep.subr.mxu0 0.0
        %1020 = vmatpush1.msra.mxu0 0.0
        %1021 = vmatprep.subr.mxu0 0.0
        %1022 = vmatpush1.msra.mxu0 0.0
        %1023 = vmatprep.subr.mxu0 0.0
        %1024 = vmatpush1.msra.mxu0 0.0
        %1025 = vmatprep.subr.mxu0 0.0
        %1026 = vmatpush1.msra.mxu0 0.0
        %1027 = vmatprep.subr.mxu0 0.0
        %1028 = vmatpush1.msra.mxu0 0.0
        %1029 = vmatprep.subr.mxu0 0.0
        %1030 = vmatpush1.msra.mxu0 0.0
        %1031 = vmatprep.subr.mxu0 0.0
        %1032 = vmatpush1.msra.mxu0 0.0
        %1033 = vmatprep.subr.mxu0 0.0
        %1034 = vmatpush1.msra.mxu0 0.0
        %1035 = vmatprep.subr.mxu0 0.0
        %1036 = vmatpush1.msra.mxu0 0.0
        %1037 = vmatprep.subr.mxu0 0.0
        %1038 = vmatpush1.msra.mxu0 0.0
        %1039 = vmatprep.subr.mxu0 0.0
        %1040 = vmatpush1.msra.mxu0 0.0
        %1041 = vmatprep.subr.mxu0 0.0
        %1042 = vmatpush1.msra.mxu0 0.0
        %1043 = vmatprep.subr.mxu0 0.0
        %1044 = vmatpush1.msra.mxu0 0.0
        %1045 = vmatprep.subr.mxu0 0.0
        %1046 = vmatpush1.msra.mxu0 0.0
        %1047 = vmatprep.mubr.f32.mxu0 0.0
        %1048 = vmatmul.mubr.f32.gmra.mrb[0].mxu0 %v936
        %v1049 = vpop.f32.mrb[0].mxu0
        %v1050 = vadd.f32 0.0, %v1049
        %v1051 = vpop.f32.mrb[0].mxu0
        %1052 = vmatprep.mubr.f32.mxu0 0.0
        %1053 = vmatmul.mubr.f32.gmra.mrb[0].mxu0 %v938
        %v1054 = vpop.f32.mrb[0].mxu0
        %v1055 = vadd.f32 0.0, %v1054
        %v1056 = vpop.f32.mrb[0].mxu0
        %1057 = vmatprep.mubr.f32.mxu0 0.0
        %1058 = vmatmul.mubr.f32.gmra.mrb[0].mxu0 %v940
        %v1059 = vpop.f32.mrb[0].mxu0
        %v1060 = vadd.f32 0.0, %v1059
        %v1061 = vpop.f32.mrb[0].mxu0
        %1062 = vmatprep.mubr.f32.mxu0 0.0
        %1063 = vmatmul.mubr.f32.gmra.mrb[0].mxu0 %v942
        %v1064 = vpop.f32.mrb[0].mxu0
        %v1065 = vadd.f32 0.0, %v1064
        %v1066 = vpop.f32.mrb[0].mxu0
        %1067 = vmatprep.mubr.f32.mxu0 0.0
        %1068 = vmatmul.mubr.f32.gmra.mrb[0].mxu0 %v944
        %v1069 = vpop.f32.mrb[0].mxu0
        %v1070 = vadd.f32 0.0, %v1069
        %v1071 = vpop.f32.mrb[0].mxu0
        %1072 = vmatprep.mubr.f32.mxu0 0.0
        %1073 = vmatmul.mubr.f32.gmra.mrb[0].mxu0 %v946
        %v1074 = vpop.f32.mrb[0].mxu0
        %v1075 = vadd.f32 0.0, %v1074
        %v1076 = vpop.f32.mrb[0].mxu0
        %1077 = vmatprep.mubr.f32.mxu0 0.0
        %1078 = vmatmul.mubr.f32.gmra.mrb[0].mxu0 %v948
        %v1079 = vpop.f32.mrb[0].mxu0
        %v1080 = vadd.f32 0.0, %v1079
        %v1081 = vpop.f32.mrb[0].mxu0
        %1082 = vmatprep.mubr.f32.mxu0 0.0
        %1083 = vmatmul.mubr.f32.gmra.mrb[0].mxu0 %v950
        %v1084 = vpop.f32.mrb[0].mxu0
        %v1085 = vadd.f32 0.0, %v1084
        %v1086 = vpop.f32.mrb[0].mxu0
        %1087 = vmatprep.mubr.f32.mxu0 0.0
        %1088 = vmatmul.mubr.f32.gmra.mrb[0].mxu0 %v952
        %v1089 = vpop.f32.mrb[0].mxu0
        %v1090 = vadd.f32 0.0, %v1089
        %v1091 = vpop.f32.mrb[0].mxu0
        %1092 = vmatprep.mubr.f32.mxu0 0.0
        %1093 = vmatmul.mubr.f32.gmra.mrb[0].mxu0 %v954
        %v1094 = vpop.f32.mrb[0].mxu0
        %v1095 = vadd.f32 0.0, %v1094
        %v1096 = vpop.f32.mrb[0].mxu0
        %1097 = vmatprep.mubr.f32.mxu0 0.0
        %1098 = vmatmul.mubr.f32.gmra.mrb[0].mxu0 %v956
        %v1099 = vpop.f32.mrb[0].mxu0
        %v1100 = vadd.f32 0.0, %v1099
        %v1101 = vpop.f32.mrb[0].mxu0
        %1102 = vmatprep.mubr.f32.mxu0 0.0
        %1103 = vmatmul.mubr.f32.gmra.mrb[0].mxu0 %v958
        %v1104 = vpop.f32.mrb[0].mxu0
        %v1105 = vadd.f32 0.0, %v1104
        %v1106 = vpop.f32.mrb[0].mxu0
        %1107 = vmatprep.mubr.f32.mxu0 0.0
        %1108 = vmatmul.mubr.f32.gmra.mrb[0].mxu0 %v960
        %v1109 = vpop.f32.mrb[0].mxu0
        %v1110 = vadd.f32 0.0, %v1109
        %v1111 = vpop.f32.mrb[0].mxu0
        %1112 = vmatprep.mubr.f32.mxu0 0.0
        %1113 = vmatmul.mubr.f32.gmra.mrb[0].mxu0 %v962
        %v1114 = vpop.f32.mrb[0].mxu0
        %v1115 = vadd.f32 0.0, %v1114
        %v1116 = vpop.f32.mrb[0].mxu0
        %1117 = vmatprep.mubr.f32.mxu0 0.0
        %1118 = vmatmul.mubr.f32.gmra.mrb[0].mxu0 %v964
        %v1119 = vpop.f32.mrb[0].mxu0
        %v1120 = vadd.f32 0.0, %v1119
        %v1121 = vpop.f32.mrb[0].mxu0
        %1122 = vmatprep.mubr.f32.mxu0 0.0
        %1123 = vmatmul.mubr.f32.gmra.mrb[0].mxu0 %v966
        %v1124 = vpop.f32.mrb[0].mxu0
        %v1125 = vadd.f32 0.0, %v1124
        %v1126 = vpop.f32.mrb[0].mxu0
        %1127 = vdwg.mxu0
        %v1128 = vmul.f32 %v919, %v1050
        %v1129 = vmul.f32 %v920, %v1055
        %v1130 = vmul.f32 %v921, %v1060
        %v1131 = vmul.f32 %v922, %v1065
        %v1132 = vmul.f32 %v923, %v1070
        %v1133 = vmul.f32 %v924, %v1075
        %v1134 = vmul.f32 %v925, %v1080
        %v1135 = vmul.f32 %v926, %v1085
        %v1136 = vmul.f32 %v927, %v1090
        %v1137 = vmul.f32 %v928, %v1095
        %v1138 = vmul.f32 %v929, %v1100
        %v1139 = vmul.f32 %v930, %v1105
        %v1140 = vmul.f32 %v931, %v1110
        %v1141 = vmul.f32 %v932, %v1115
        %v1142 = vmul.f32 %v933, %v1120
        %v1143 = vmul.f32 %v934, %v1125
        %1144 = vadd.xlane.f32.xlu0 %v1128
        %v1145 = vpop.xlane.xlu0 %1144
        %1146 = vadd.xlane.f32.xlu0 %v1129
        %v1147 = vpop.xlane.xlu0 %1146
        %1148 = vadd.xlane.f32.xlu0 %v1130
        %v1149 = vpop.xlane.xlu0 %1148
        %1150 = vadd.xlane.f32.xlu0 %v1131
        %v1151 = vpop.xlane.xlu0 %1150
        %1152 = vadd.xlane.f32.xlu0 %v1132
        %v1153 = vpop.xlane.xlu0 %1152
        %1154 = vadd.xlane.f32.xlu0 %v1133
        %v1155 = vpop.xlane.xlu0 %1154
        %1156 = vadd.xlane.f32.xlu0 %v1134
        %v1157 = vpop.xlane.xlu0 %1156
        %1158 = vadd.xlane.f32.xlu0 %v1135
        %v1159 = vpop.xlane.xlu0 %1158
        %1160 = vadd.xlane.f32.xlu0 %v1136
        %v1161 = vpop.xlane.xlu0 %1160
        %1162 = vadd.xlane.f32.xlu0 %v1137
        %v1163 = vpop.xlane.xlu0 %1162
        %1164 = vadd.xlane.f32.xlu0 %v1138
        %v1165 = vpop.xlane.xlu0 %1164
        %1166 = vadd.xlane.f32.xlu0 %v1139
        %v1167 = vpop.xlane.xlu0 %1166
        %1168 = vadd.xlane.f32.xlu0 %v1140
        %v1169 = vpop.xlane.xlu0 %1168
        %1170 = vadd.xlane.f32.xlu0 %v1141
        %v1171 = vpop.xlane.xlu0 %1170
        %1172 = vadd.xlane.f32.xlu0 %v1142
        %v1173 = vpop.xlane.xlu0 %1172
        %1174 = vadd.xlane.f32.xlu0 %v1143
        %v1175 = vpop.xlane.xlu0 %1174
        %v1176 = vmul.f32 %v1145, 1.442695
        %v1177 = vpow.pop %v1176
        %v1178 = vmul.f32 %v1147, 1.442695
        %v1179 = vpow.pop %v1178
        %v1180 = vmul.f32 %v1149, 1.442695
        %v1181 = vpow.pop %v1180
        %v1182 = vmul.f32 %v1151, 1.442695
        %v1183 = vpow.pop %v1182
        %v1184 = vmul.f32 %v1153, 1.442695
        %v1185 = vpow.pop %v1184
        %v1186 = vmul.f32 %v1155, 1.442695
        %v1187 = vpow.pop %v1186
        %v1188 = vmul.f32 %v1157, 1.442695
        %v1189 = vpow.pop %v1188
        %v1190 = vmul.f32 %v1159, 1.442695
        %v1191 = vpow.pop %v1190
        %v1192 = vmul.f32 %v1161, 1.442695
        %v1193 = vpow.pop %v1192
        %v1194 = vmul.f32 %v1163, 1.442695
        %v1195 = vpow.pop %v1194
        %v1196 = vmul.f32 %v1165, 1.442695
        %v1197 = vpow.pop %v1196
        %v1198 = vmul.f32 %v1167, 1.442695
        %v1199 = vpow.pop %v1198
        %v1200 = vmul.f32 %v1169, 1.442695
        %v1201 = vpow.pop %v1200
        %v1202 = vmul.f32 %v1171, 1.442695
        %v1203 = vpow.pop %v1202
        %v1204 = vmul.f32 %v1173, 1.442695
        %v1205 = vpow.pop %v1204
        %v1206 = vmul.f32 %v1175, 1.442695
        %v1207 = vpow.pop %v1206
        %v1208 = vld [vmem:[%s6] sm:$0xff]
        %v1209 = vld [vmem:[%s6 + $0x8] sm:$0xff]
        %v1210 = vld [vmem:[%s6 + $0x10] sm:$0xff]
        %v1211 = vld [vmem:[%s6 + $0x18] sm:$0xff]
        %v1212 = vld [vmem:[%s6 + $0x20] sm:$0xff]
        %v1213 = vld [vmem:[%s6 + $0x28] sm:$0xff]
        %v1214 = vld [vmem:[%s6 + $0x30] sm:$0xff]
        %v1215 = vld [vmem:[%s6 + $0x38] sm:$0xff]
        %v1216 = vld [vmem:[%s6 + $0x40] sm:$0xff]
        %v1217 = vld [vmem:[%s6 + $0x48] sm:$0xff]
        %v1218 = vld [vmem:[%s6 + $0x50] sm:$0xff]
        %v1219 = vld [vmem:[%s6 + $0x58] sm:$0xff]
        %v1220 = vld [vmem:[%s6 + $0x60] sm:$0xff]
        %v1221 = vld [vmem:[%s6 + $0x68] sm:$0xff]
        %v1222 = vld [vmem:[%s6 + $0x70] sm:$0xff]
        %v1223 = vld [vmem:[%s6 + $0x78] sm:$0xff]
        %1224 = vmatprep.subr.mxu0 0.0
        %1225 = vmatpush1.msra.mxu0 %v1208
        %1226 = vmatprep.subr.mxu0 0.0
        %1227 = vmatpush1.msra.mxu0 %v1209
        %1228 = vmatprep.subr.mxu0 0.0
        %1229 = vmatpush1.msra.mxu0 %v1210
        %1230 = vmatprep.subr.mxu0 0.0
        %1231 = vmatpush1.msra.mxu0 %v1211
        %1232 = vmatprep.subr.mxu0 0.0
        %1233 = vmatpush1.msra.mxu0 %v1212
        %1234 = vmatprep.subr.mxu0 0.0
        %1235 = vmatpush1.msra.mxu0 %v1213
        %1236 = vmatprep.subr.mxu0 0.0
        %1237 = vmatpush1.msra.mxu0 %v1214
        %1238 = vmatprep.subr.mxu0 0.0
        %1239 = vmatpush1.msra.mxu0 %v1215
        %1240 = vmatprep.subr.mxu0 0.0
        %1241 = vmatpush1.msra.mxu0 %v1216
        %1242 = vmatprep.subr.mxu0 0.0
        %1243 = vmatpush1.msra.mxu0 %v1217
        %1244 = vmatprep.subr.mxu0 0.0
        %1245 = vmatpush1.msra.mxu0 %v1218
        %1246 = vmatprep.subr.mxu0 0.0
        %1247 = vmatpush1.msra.mxu0 %v1219
        %1248 = vmatprep.subr.mxu0 0.0
        %1249 = vmatpush1.msra.mxu0 %v1220
        %1250 = vmatprep.subr.mxu0 0.0
        %1251 = vmatpush1.msra.mxu0 %v1221
        %1252 = vmatprep.subr.mxu0 0.0
        %1253 = vmatpush1.msra.mxu0 %v1222
        %1254 = vmatprep.subr.mxu0 0.0
        %1255 = vmatpush1.msra.mxu0 %v1223
        %1256 = vmatprep.subr.mxu0 0.0
        %1257 = vmatpush1.msra.mxu0 0.0
        %1258 = vmatprep.subr.mxu0 0.0
        %1259 = vmatpush1.msra.mxu0 0.0
        %1260 = vmatprep.subr.mxu0 0.0
        %1261 = vmatpush1.msra.mxu0 0.0
        %1262 = vmatprep.subr.mxu0 0.0
        %1263 = vmatpush1.msra.mxu0 0.0
        %1264 = vmatprep.subr.mxu0 0.0
        %1265 = vmatpush1.msra.mxu0 0.0
        %1266 = vmatprep.subr.mxu0 0.0
        %1267 = vmatpush1.msra.mxu0 0.0
        %1268 = vmatprep.subr.mxu0 0.0
        %1269 = vmatpush1.msra.mxu0 0.0
        %1270 = vmatprep.subr.mxu0 0.0
        %1271 = vmatpush1.msra.mxu0 0.0
        %1272 = vmatprep.subr.mxu0 0.0
        %1273 = vmatpush1.msra.mxu0 0.0
        %1274 = vmatprep.subr.mxu0 0.0
        %1275 = vmatpush1.msra.mxu0 0.0
        %1276 = vmatprep.subr.mxu0 0.0
        %1277 = vmatpush1.msra.mxu0 0.0
        %1278 = vmatprep.subr.mxu0 0.0
        %1279 = vmatpush1.msra.mxu0 0.0
        %1280 = vmatprep.subr.mxu0 0.0
        %1281 = vmatpush1.msra.mxu0 0.0
        %1282 = vmatprep.subr.mxu0 0.0
        %1283 = vmatpush1.msra.mxu0 0.0
        %1284 = vmatprep.subr.mxu0 0.0
        %1285 = vmatpush1.msra.mxu0 0.0
        %1286 = vmatprep.subr.mxu0 0.0
        %1287 = vmatpush1.msra.mxu0 0.0
        %1288 = vmatprep.mubr.f32.mxu0 0.0
        %1289 = vmatmul.mubr.f32.gmra.mrb[0].mxu0 %v919
        %v1290 = vpop.f32.mrb[0].mxu0
        %v1291 = vadd.f32 0.0, %v1290
        %v1292 = vpop.f32.mrb[0].mxu0
        %1293 = vmatprep.mubr.f32.mxu0 0.0
        %1294 = vmatmul.mubr.f32.gmra.mrb[0].mxu0 %v920
        %v1295 = vpop.f32.mrb[0].mxu0
        %v1296 = vadd.f32 0.0, %v1295
        %v1297 = vpop.f32.mrb[0].mxu0
        %1298 = vmatprep.mubr.f32.mxu0 0.0
        %1299 = vmatmul.mubr.f32.gmra.mrb[0].mxu0 %v921
        %v1300 = vpop.f32.mrb[0].mxu0
        %v1301 = vadd.f32 0.0, %v1300
        %v1302 = vpop.f32.mrb[0].mxu0
        %1303 = vmatprep.mubr.f32.mxu0 0.0
        %1304 = vmatmul.mubr.f32.gmra.mrb[0].mxu0 %v922
        %v1305 = vpop.f32.mrb[0].mxu0
        %v1306 = vadd.f32 0.0, %v1305
        %v1307 = vpop.f32.mrb[0].mxu0
        %1308 = vmatprep.mubr.f32.mxu0 0.0
        %1309 = vmatmul.mubr.f32.gmra.mrb[0].mxu0 %v923
        %v1310 = vpop.f32.mrb[0].mxu0
        %v1311 = vadd.f32 0.0, %v1310
        %v1312 = vpop.f32.mrb[0].mxu0
        %1313 = vmatprep.mubr.f32.mxu0 0.0
        %1314 = vmatmul.mubr.f32.gmra.mrb[0].mxu0 %v924
        %v1315 = vpop.f32.mrb[0].mxu0
        %v1316 = vadd.f32 0.0, %v1315
        %v1317 = vpop.f32.mrb[0].mxu0
        %1318 = vmatprep.mubr.f32.mxu0 0.0
        %1319 = vmatmul.mubr.f32.gmra.mrb[0].mxu0 %v925
        %v1320 = vpop.f32.mrb[0].mxu0
        %v1321 = vadd.f32 0.0, %v1320
        %v1322 = vpop.f32.mrb[0].mxu0
        %1323 = vmatprep.mubr.f32.mxu0 0.0
        %1324 = vmatmul.mubr.f32.gmra.mrb[0].mxu0 %v926
        %v1325 = vpop.f32.mrb[0].mxu0
        %v1326 = vadd.f32 0.0, %v1325
        %v1327 = vpop.f32.mrb[0].mxu0
        %1328 = vmatprep.mubr.f32.mxu0 0.0
        %1329 = vmatmul.mubr.f32.gmra.mrb[0].mxu0 %v927
        %v1330 = vpop.f32.mrb[0].mxu0
        %v1331 = vadd.f32 0.0, %v1330
        %v1332 = vpop.f32.mrb[0].mxu0
        %1333 = vmatprep.mubr.f32.mxu0 0.0
        %1334 = vmatmul.mubr.f32.gmra.mrb[0].mxu0 %v928
        %v1335 = vpop.f32.mrb[0].mxu0
        %v1336 = vadd.f32 0.0, %v1335
        %v1337 = vpop.f32.mrb[0].mxu0
        %1338 = vmatprep.mubr.f32.mxu0 0.0
        %1339 = vmatmul.mubr.f32.gmra.mrb[0].mxu0 %v929
        %v1340 = vpop.f32.mrb[0].mxu0
        %v1341 = vadd.f32 0.0, %v1340
        %v1342 = vpop.f32.mrb[0].mxu0
        %1343 = vmatprep.mubr.f32.mxu0 0.0
        %1344 = vmatmul.mubr.f32.gmra.mrb[0].mxu0 %v930
        %v1345 = vpop.f32.mrb[0].mxu0
        %v1346 = vadd.f32 0.0, %v1345
        %v1347 = vpop.f32.mrb[0].mxu0
        %1348 = vmatprep.mubr.f32.mxu0 0.0
        %1349 = vmatmul.mubr.f32.gmra.mrb[0].mxu0 %v931
        %v1350 = vpop.f32.mrb[0].mxu0
        %v1351 = vadd.f32 0.0, %v1350
        %v1352 = vpop.f32.mrb[0].mxu0
        %1353 = vmatprep.mubr.f32.mxu0 0.0
        %1354 = vmatmul.mubr.f32.gmra.mrb[0].mxu0 %v932
        %v1355 = vpop.f32.mrb[0].mxu0
        %v1356 = vadd.f32 0.0, %v1355
        %v1357 = vpop.f32.mrb[0].mxu0
        %1358 = vmatprep.mubr.f32.mxu0 0.0
        %1359 = vmatmul.mubr.f32.gmra.mrb[0].mxu0 %v933
        %v1360 = vpop.f32.mrb[0].mxu0
        %v1361 = vadd.f32 0.0, %v1360
        %v1362 = vpop.f32.mrb[0].mxu0
        %1363 = vmatprep.mubr.f32.mxu0 0.0
        %1364 = vmatmul.mubr.f32.gmra.mrb[0].mxu0 %v934
        %v1365 = vpop.f32.mrb[0].mxu0
        %v1366 = vadd.f32 0.0, %v1365
        %v1367 = vpop.f32.mrb[0].mxu0
        %1368 = vdwg.mxu0
        %v1369 = vmul.f32 %v1177, %v1291
        %v1370 = vmul.f32 %v1179, %v1296
        %v1371 = vmul.f32 %v1181, %v1301
        %v1372 = vmul.f32 %v1183, %v1306
        %v1373 = vmul.f32 %v1185, %v1311
        %v1374 = vmul.f32 %v1187, %v1316
        %v1375 = vmul.f32 %v1189, %v1321
        %v1376 = vmul.f32 %v1191, %v1326
        %v1377 = vmul.f32 %v1193, %v1331
        %v1378 = vmul.f32 %v1195, %v1336
        %v1379 = vmul.f32 %v1197, %v1341
        %v1380 = vmul.f32 %v1199, %v1346
        %v1381 = vmul.f32 %v1201, %v1351
        %v1382 = vmul.f32 %v1203, %v1356
        %v1383 = vmul.f32 %v1205, %v1361
        %v1384 = vmul.f32 %v1207, %v1366
        %1385 = vst [vmem:[%s295] sm:$0xff] %v1369
        %1386 = vst [vmem:[%s295 + $0x8] sm:$0xff] %v1370
        %1387 = vst [vmem:[%s295 + $0x10] sm:$0xff] %v1371
        %1388 = vst [vmem:[%s295 + $0x18] sm:$0xff] %v1372
        %1389 = vst [vmem:[%s295 + $0x20] sm:$0xff] %v1373
        %1390 = vst [vmem:[%s295 + $0x28] sm:$0xff] %v1374
        %1391 = vst [vmem:[%s295 + $0x30] sm:$0xff] %v1375
        %1392 = vst [vmem:[%s295 + $0x38] sm:$0xff] %v1376
        %1393 = vst [vmem:[%s295 + $0x40] sm:$0xff] %v1377
        %1394 = vst [vmem:[%s295 + $0x48] sm:$0xff] %v1378
        %1395 = vst [vmem:[%s295 + $0x50] sm:$0xff] %v1379
        %1396 = vst [vmem:[%s295 + $0x58] sm:$0xff] %v1380
        %1397 = vst [vmem:[%s295 + $0x60] sm:$0xff] %v1381
        %1398 = vst [vmem:[%s295 + $0x68] sm:$0xff] %v1382
        %1399 = vst [vmem:[%s295 + $0x70] sm:$0xff] %v1383
        %1400 = vst [vmem:[%s295 + $0x78] sm:$0xff] %v1384
        %s1401 = smul.u32 16, %s19
        %p1402 = scmp.lt.s32.totalorder %s1401, 31
        %s1403 = scalar_select %p1402, %s1401, 31
        %s1404 = smul.addr %s1403, 8
        %s1405 = scalar_lea.vmem %s7, %s1404
        // Predicated region
        $region53: #{forward.1} parent=47 // pred_check
          %p1406 = pneg %p189
        $region54: #{forward.1} parent=47 // pred_check_branch
          %1408 = sbr.rel (%p1406) target = $region56
        $region55: #{forward.1} parent=47 // pred_region
          %s1409 = smul.u32 16, %s19
        $region56: #{forward.1} parent=47 // pred_fallthru
          _
      $region48: #{forward.1} parent=5 // pred_fallthru
        _
      %p1410 = scmp.le.s32.totalorder 2, %s14
      // Predicated region
      $region57: #{forward.1} parent=5 // pred_check
        %p1411 = pneg %p1410
      $region58: #{forward.1} parent=5 // pred_check_branch
        %1413 = sbr.rel (%p1411) target = $region60
      $region59: #{forward.1} parent=5 // pred_region
        %s1414 = ssub.s32 %s14, 2
        // Predicated region
        $region61: #{forward.1} parent=59 // pred_check
          %p1415 = pneg %p195
        $region62: #{forward.1} parent=59 // pred_check_branch
          %1417 = sbr.rel (%p1415) target = $region64
        $region63: #{forward.1} parent=59 // pred_region
          %s1418 = smul.u32 16, %s20
          %p1419 = scmp.lt.s32.totalorder %s1418, 31
          %s1420 = scalar_select %p1419, %s1418, 31
          %s1421 = smul.addr %s1420, 8
          %s1422 = scalar_lea.vmem %s7, %s1421
        $region64: #{forward.1} parent=59 // pred_fallthru
          _
      $region60: #{forward.1} parent=5 // pred_fallthru
        _
    $region6: #{forward.1} parent=1 // loop_footer
      %s18 = sadd.s32 1, %s14
    $region7: #{forward.1} parent=1 // loop_footer_branch
      %13 = sbr.rel target = $region3
    $region8: #{forward.1} parent=1 // loop_exit
      _
    %1423 = vsyncpa [#allocation3], 1
    %s1424 = scalar_lea.sflag [#allocation3], 1
    %1425 = vsyncpa %s1424, 1

</llo_original>
